<compile_context>
chip_gen: v7x
topology: tpu7x:2x2x1
jax: 0.10.0
libtpu: 0.0.40
codegen_flags: <defaults>
</compile_context>

<pallas_src>
import jax
import jax.numpy as jnp
from jax.experimental import pallas as pl
from jax.experimental.pallas import tpu as pltpu

LRELU_SLOPE = 0.02


def _round_up(x, m):
    return (x + m - 1) // m * m


def _apply_activation(acc, activation):
    """Post-matmul activation, computed in f32 (v5e has no bf16 VPU/EUP)."""
    if activation is None:
        return acc
    if activation == 'relu':
        return jnp.maximum(acc, 0.0)
    if activation == 'lrelu':
        return jnp.where(acc >= 0.0, acc, LRELU_SLOPE * acc)
    if activation == 'tanh':
        return jnp.tanh(acc)
    if activation == 'elu':
        return jnp.where(acc >= 0.0, acc, jnp.exp(jnp.minimum(acc, 0.0)) - 1.0)
    raise ValueError('%s not recognized.' % activation)


# ---------------------------------------------------------------------------
# Pallas kernel: fused in-kernel im2col + k*k matmuls + bias + activation
# ---------------------------------------------------------------------------
def _make_fused_conv_kernel(k, w_pad, m_out, activation):
    # Flat lane shift for tap (ky, kx) on the padded, row-major spatial grid.
    shifts = [ky * w_pad + kx for ky in range(k) for kx in range(k)]

    def kernel(x_ref, w_ref, b_ref, o_ref):
        # x_ref: (1, C_in, M_in) bf16      w_ref: (1, k*k, C_out, C_in) bf16
        # b_ref: (1, C_out, 1)  f32        o_ref: (1, C_out, M_out)
        acc = None
        for j, d in enumerate(shifts):
            xs = x_ref[0, :, pl.ds(d, m_out)]          # static lane window
            wj = w_ref[0, j]                           # (C_out, C_in)
            t = jnp.dot(wj, xs, preferred_element_type=jnp.float32)
            acc = t if acc is None else acc + t
        acc = acc + b_ref[0]                           # (C_out, 1) broadcast
        acc = _apply_activation(acc, activation)
        o_ref[0] = acc.astype(o_ref.dtype)

    return kernel


def _conv_block_stack(x_stack, w_stack, b_stack, stride, activation, out_dtype):
    """Fused Conv2DBlock for a stack of sibling streams.

    x_stack: (S, C_in, N, H, W)   channel-major activations
    w_stack: (S, C_out, C_in, k, k)
    b_stack: (S, C_out)
    returns: (S, C_out, N, H_out, W_out) in out_dtype
    """
    s, c_in, n, h, w = x_stack.shape
    _, c_out, _, k, _ = w_stack.shape
    p = k // 2
    h_pad, w_pad = h + 2 * p, w + 2 * p
    h_out = (h + 2 * p - k) // stride + 1
    w_out = (w + 2 * p - k) // stride + 1

    # ---- wrapper-side layout plumbing (replicate pad + flatten), no im2col ----
    if p > 0:
        x_stack = jnp.pad(x_stack, ((0, 0), (0, 0), (0, 0), (p, p), (p, p)),
                          mode='edge')
    l_pad = h_pad * w_pad
    m = n * l_pad
    max_d = (k - 1) * w_pad + (k - 1)
    m_out = _round_up(m, 128)              # lane-dense output width
    m_in = _round_up(m_out + max_d, 128)   # input width incl. shift halo

    x_flat = x_stack.reshape(s, c_in, m)
    if m_in > m:
        x_flat = jnp.pad(x_flat, ((0, 0), (0, 0), (0, m_in - m)))
    x_flat = x_flat.astype(jnp.bfloat16)                       # streamed in bf16

    w_k = jnp.transpose(w_stack.reshape(s, c_out, c_in, k * k), (0, 3, 1, 2))
    w_k = w_k.astype(jnp.bfloat16)                             # (S, k*k, Cout, Cin)
    b_col = b_stack.reshape(s, c_out, 1).astype(jnp.float32)

    kernel = _make_fused_conv_kernel(k, w_pad, m_out, activation)

    out_bytes = jnp.dtype(out_dtype).itemsize
    blk_bytes = (c_in * m_in * 2 + k * k * c_out * c_in * 2 + c_out * 4
                 + c_out * m_out * out_bytes)
    # Explicit, generation-safe VMEM budget (<= v7x 64 MiB physical).
    vmem_limit = int(min(48 * 2**20, max(16 * 2**20, 6 * blk_bytes)))

    cost = pl.CostEstimate(
        flops=2 * s * c_out * c_in * k * k * m_out,
        transcendentals=0,
        bytes_accessed=(s * c_in * m_in * 2 + s * k * k * c_out * c_in * 2
                        + s * c_out * 4 + s * c_out * m_out * out_bytes),
    )

    out = pl.pallas_call(
        kernel,
        out_shape=jax.ShapeDtypeStruct((s, c_out, m_out), out_dtype),
        grid_spec=pltpu.PrefetchScalarGridSpec(
            num_scalar_prefetch=0,
            grid=(s,),                                       # one step per stream
            in_specs=[
                pl.BlockSpec((1, c_in, m_in), lambda i: (i, 0, 0)),
                pl.BlockSpec((1, k * k, c_out, c_in), lambda i: (i, 0, 0, 0)),
                pl.BlockSpec((1, c_out, 1), lambda i: (i, 0, 0)),
            ],
            out_specs=pl.BlockSpec((1, c_out, m_out), lambda i: (i, 0, 0)),
        ),
        compiler_params=pltpu.CompilerParams(
            dimension_semantics=("parallel",),               # megacore-friendly
            vmem_limit_bytes=vmem_limit,
        ),
        cost_estimate=cost,
    )(x_flat, w_k, b_col)

    # Crop the dense padded-grid output back to the valid (strided) positions.
    out = out[:, :, :m].reshape(s, c_out, n, h_pad, w_pad)
    out = out[:, :, :, 0:(h_out - 1) * stride + 1:stride,
              0:(w_out - 1) * stride + 1:stride]
    return out


# ---------------------------------------------------------------------------
# SiameseNet
# ---------------------------------------------------------------------------
class SiameseNetPallas:
    """JAX/Pallas port of SiameseNet (norm=None)."""

    def __init__(self, input_channels, filters, kernel_sizes, strides,
                 norm=None, activation='relu', *, key):
        if norm is not None:
            # TODO(synk): norm layers not implemented (SiameseNet default is None).
            raise NotImplementedError('norm layers not implemented')
        if activation == 'prelu':
            raise NotImplementedError('prelu (learned slope) not implemented')
        self._activation = activation
        self._filters = list(filters)
        self._strides = list(strides)
        self.output_channels = filters[-1]

        n_streams = len(input_channels)
        n_layers = len(filters)
        keys = jax.random.split(key, 2 * (n_streams * n_layers + 1))
        self._ki = 0

        def init_conv(c_in, c_out, k):
            fan_in = c_in * k * k
            wkey, bkey = keys[self._ki], keys[self._ki + 1]
            self._ki += 2
            wgt = jax.random.normal(wkey, (c_out, c_in, k, k), jnp.float32)
            wgt = wgt * jnp.sqrt(2.0 / fan_in)
            b = 0.1 * jax.random.normal(bkey, (c_out,), jnp.float32)
            return wgt, b

        self.stream_params = []
        for ch in input_channels:
            blocks = []
            c_prev = ch
            for filt, ksize, stride in zip(filters, kernel_sizes, strides):
                wgt, b = init_conv(c_prev, filt, ksize)
                blocks.append((wgt, b, stride))
                c_prev = filt
            self.stream_params.append(blocks)

        self.fuse_w, self.fuse_b = init_conv(filters[-1] * n_streams,
                                             filters[-1], 1)

    def __call__(self, xs):
        n_streams = len(self.stream_params)
        if len(xs) != n_streams:
            raise ValueError('Expected a list of tensors of size %d.' % n_streams)
        out_dtype_final = xs[0].dtype

        # NCHW -> channel-major (C, N, H, W), once per stream.
        ys = [jnp.transpose(x, (1, 0, 2, 3)) for x in xs]

        for li in range(len(self._filters)):
            stride = self._strides[li]
            wl = [self.stream_params[si][li][0] for si in range(n_streams)]
            bl = [self.stream_params[si][li][1] for si in range(n_streams)]
            shapes = {y.shape for y in ys}
            if len(shapes) == 1:
                # One fused pallas_call covering all streams of this layer.
                o = _conv_block_stack(jnp.stack(ys, 0), jnp.stack(wl, 0),
                                      jnp.stack(bl, 0), stride,
                                      self._activation, jnp.bfloat16)
                ys = [o[si] for si in range(n_streams)]
            else:
                ys = [_conv_block_stack(y[None], wl[si][None], bl[si][None],
                                        stride, self._activation,
                                        jnp.bfloat16)[0]
                      for si, y in enumerate(ys)]

        # Channel concat (== torch.cat along dim=1 in NCHW) + 1x1 fuse conv.
        y = jnp.concatenate(ys, axis=0)                    # (S*C_f, N, H, W)
        o = _conv_block_stack(y[None], self.fuse_w[None], self.fuse_b[None],
                              1, self._activation, out_dtype_final)[0]
        return jnp.transpose(o, (1, 0, 2, 3))              # back to NCHW once


# ---------------------------------------------------------------------------
# Pure-JAX reference (same semantics as the PyTorch forward), all activations
# ---------------------------------------------------------------------------
def _conv2d_block_ref(x, weight, bias, stride, activation):
    k = weight.shape[-1]
    p = k // 2
    if p > 0:
        x = jnp.pad(x, ((0, 0), (0, 0), (p, p), (p, p)), mode='edge')
    out = jax.lax.conv_general_dilated(
        x, weight, window_strides=(stride, stride), padding='VALID',
        dimension_numbers=('NCHW', 'OIHW', 'NCHW'))
    out = out + bias[None, :, None, None]
    return _apply_activation(out, activation)


def _siamese_ref(net, xs):
    streams = []
    for x, blocks in zip(xs, net.stream_params):
        y = x
        for wgt, b, stride in blocks:
            y = _conv2d_block_ref(y, wgt, b, stride, net._activation)
        streams.append(y)
    y = jnp.concatenate(streams, axis=1)
    return _conv2d_block_ref(y, net.fuse_w, net.fuse_b, 1, net._activation)


if __name__ == "__main__":
    key = jax.random.PRNGKey(0)
    k_net, k_x0, k_x1, k_net2, k_x2 = jax.random.split(key, 5)

    # SiameseNet config: two input streams, two conv layers each + 1x1 fuse.
    input_channels = [3, 3]
    filters = [8, 16]
    kernel_sizes = [3, 3]
    strides = [1, 1]

    net = SiameseNetPallas(input_channels, filters, kernel_sizes, strides,
                           norm=None, activation='relu', key=k_net)

    N, H, W = 2, 16, 16
    xs = [jax.random.normal(k_x0, (N, input_channels[0], H, W), jnp.float32),
          jax.random.normal(k_x1, (N, input_channels[1], H, W), jnp.float32)]

    out = jax.block_until_ready(net(xs))
    assert out.shape == (N, filters[-1], H, W), out.shape

    ref = _siamese_ref(net, xs)
    max_err = float(jnp.max(jnp.abs(out - ref)))
    assert jnp.allclose(out, ref, atol=5e-2, rtol=5e-2), max_err

    # Cover a non-ReLU activation path (review: lrelu branch was untested).
    net2 = SiameseNetPallas([2], [8], [3], [1], norm=None, activation='lrelu',
                            key=k_net2)
    xs2 = [jax.random.normal(k_x2, (1, 2, 8, 8), jnp.float32)]
    out2 = jax.block_until_ready(net2(xs2))
    assert out2.shape == (1, 8, 8, 8), out2.shape
    ref2 = _siamese_ref(net2, xs2)
    max_err2 = float(jnp.max(jnp.abs(out2 - ref2)))
    assert jnp.allclose(out2, ref2, atol=5e-2, rtol=5e-2), max_err2

    print("KERNEL_OK")
</pallas_src>

<mosaic_0001>
module attributes {stable_mosaic.version = 11 : i64} {
  func.func @kernel(%arg0: i32, %arg1: memref<1x3x896xbf16, #tpu.memory_space<vmem>>, %arg2: memref<1x9x8x3xbf16, #tpu.memory_space<vmem>>, %arg3: memref<1x8x1xf32, #tpu.memory_space<vmem>>, %arg4: memref<1x8x768xbf16, #tpu.memory_space<vmem>>) attributes {dimension_semantics = [#tpu.dimension_semantics<parallel>], iteration_bounds = array<i64: 2>, scalar_prefetch = 0 : i64, scratch_operands = 0 : i64, tpu.core_type = #tpu.core_type<tc>, window_params = [{transform_indices = @transform_0, window_bounds = array<i64: 1, 3, 896>}, {transform_indices = @transform_1, window_bounds = array<i64: 1, 9, 8, 3>}, {transform_indices = @transform_2, window_bounds = array<i64: 1, 8, 1>}, {transform_indices = @transform_3, window_bounds = array<i64: 1, 8, 768>}]} {
    %c0 = arith.constant 0 : index
    %c0_0 = arith.constant 0 : index
    %c0_1 = arith.constant 0 : index
    %0 = vector.load %arg1[%c0, %c0_0, %c0_1] : memref<1x3x896xbf16, #tpu.memory_space<vmem>>, vector<1x3x768xbf16>
    %1 = vector.shape_cast %0 : vector<1x3x768xbf16> to vector<3x768xbf16>
    %c0_2 = arith.constant 0 : index
    %c0_3 = arith.constant 0 : index
    %c0_4 = arith.constant 0 : index
    %c0_5 = arith.constant 0 : index
    %2 = vector.load %arg2[%c0_2, %c0_3, %c0_4, %c0_5] : memref<1x9x8x3xbf16, #tpu.memory_space<vmem>>, vector<1x1x8x3xbf16>
    %3 = vector.shape_cast %2 : vector<1x1x8x3xbf16> to vector<8x3xbf16>
    %cst = arith.constant dense<0.000000e+00> : vector<8x768xf32>
    %4 = tpu.matmul %3, %1, %cst {dimension_numbers = #tpu.dot_dimension_numbers<[1], [0], [0], [1], [0, 0, 1, 1], [], []>} : vector<8x3xbf16>, vector<3x768xbf16>, vector<8x768xf32> -> vector<8x768xf32>
    %c0_6 = arith.constant 0 : index
    %c0_7 = arith.constant 0 : index
    %c1 = arith.constant 1 : index
    %5 = vector.load %arg1[%c0_6, %c0_7, %c1] : memref<1x3x896xbf16, #tpu.memory_space<vmem>>, vector<1x3x768xbf16>
    %6 = vector.shape_cast %5 : vector<1x3x768xbf16> to vector<3x768xbf16>
    %c0_8 = arith.constant 0 : index
    %c1_9 = arith.constant 1 : index
    %c0_10 = arith.constant 0 : index
    %c0_11 = arith.constant 0 : index
    %7 = vector.load %arg2[%c0_8, %c1_9, %c0_10, %c0_11] : memref<1x9x8x3xbf16, #tpu.memory_space<vmem>>, vector<1x1x8x3xbf16>
    %8 = vector.shape_cast %7 : vector<1x1x8x3xbf16> to vector<8x3xbf16>
    %cst_12 = arith.constant dense<0.000000e+00> : vector<8x768xf32>
    %9 = tpu.matmul %8, %6, %cst_12 {dimension_numbers = #tpu.dot_dimension_numbers<[1], [0], [0], [1], [0, 0, 1, 1], [], []>} : vector<8x3xbf16>, vector<3x768xbf16>, vector<8x768xf32> -> vector<8x768xf32>
    %10 = arith.addf %4, %9 : vector<8x768xf32>
    %c0_13 = arith.constant 0 : index
    %c0_14 = arith.constant 0 : index
    %c2 = arith.constant 2 : index
    %11 = vector.load %arg1[%c0_13, %c0_14, %c2] : memref<1x3x896xbf16, #tpu.memory_space<vmem>>, vector<1x3x768xbf16>
    %12 = vector.shape_cast %11 : vector<1x3x768xbf16> to vector<3x768xbf16>
    %c0_15 = arith.constant 0 : index
    %c2_16 = arith.constant 2 : index
    %c0_17 = arith.constant 0 : index
    %c0_18 = arith.constant 0 : index
    %13 = vector.load %arg2[%c0_15, %c2_16, %c0_17, %c0_18] : memref<1x9x8x3xbf16, #tpu.memory_space<vmem>>, vector<1x1x8x3xbf16>
    %14 = vector.shape_cast %13 : vector<1x1x8x3xbf16> to vector<8x3xbf16>
    %cst_19 = arith.constant dense<0.000000e+00> : vector<8x768xf32>
    %15 = tpu.matmul %14, %12, %cst_19 {dimension_numbers = #tpu.dot_dimension_numbers<[1], [0], [0], [1], [0, 0, 1, 1], [], []>} : vector<8x3xbf16>, vector<3x768xbf16>, vector<8x768xf32> -> vector<8x768xf32>
    %16 = arith.addf %10, %15 : vector<8x768xf32>
    %c0_20 = arith.constant 0 : index
    %c0_21 = arith.constant 0 : index
    %c18 = arith.constant 18 : index
    %17 = vector.load %arg1[%c0_20, %c0_21, %c18] : memref<1x3x896xbf16, #tpu.memory_space<vmem>>, vector<1x3x768xbf16>
    %18 = vector.shape_cast %17 : vector<1x3x768xbf16> to vector<3x768xbf16>
    %c0_22 = arith.constant 0 : index
    %c3 = arith.constant 3 : index
    %c0_23 = arith.constant 0 : index
    %c0_24 = arith.constant 0 : index
    %19 = vector.load %arg2[%c0_22, %c3, %c0_23, %c0_24] : memref<1x9x8x3xbf16, #tpu.memory_space<vmem>>, vector<1x1x8x3xbf16>
    %20 = vector.shape_cast %19 : vector<1x1x8x3xbf16> to vector<8x3xbf16>
    %cst_25 = arith.constant dense<0.000000e+00> : vector<8x768xf32>
    %21 = tpu.matmul %20, %18, %cst_25 {dimension_numbers = #tpu.dot_dimension_numbers<[1], [0], [0], [1], [0, 0, 1, 1], [], []>} : vector<8x3xbf16>, vector<3x768xbf16>, vector<8x768xf32> -> vector<8x768xf32>
    %22 = arith.addf %16, %21 : vector<8x768xf32>
    %c0_26 = arith.constant 0 : index
    %c0_27 = arith.constant 0 : index
    %c19 = arith.constant 19 : index
    %23 = vector.load %arg1[%c0_26, %c0_27, %c19] : memref<1x3x896xbf16, #tpu.memory_space<vmem>>, vector<1x3x768xbf16>
    %24 = vector.shape_cast %23 : vector<1x3x768xbf16> to vector<3x768xbf16>
    %c0_28 = arith.constant 0 : index
    %c4 = arith.constant 4 : index
    %c0_29 = arith.constant 0 : index
    %c0_30 = arith.constant 0 : index
    %25 = vector.load %arg2[%c0_28, %c4, %c0_29, %c0_30] : memref<1x9x8x3xbf16, #tpu.memory_space<vmem>>, vector<1x1x8x3xbf16>
    %26 = vector.shape_cast %25 : vector<1x1x8x3xbf16> to vector<8x3xbf16>
    %cst_31 = arith.constant dense<0.000000e+00> : vector<8x768xf32>
    %27 = tpu.matmul %26, %24, %cst_31 {dimension_numbers = #tpu.dot_dimension_numbers<[1], [0], [0], [1], [0, 0, 1, 1], [], []>} : vector<8x3xbf16>, vector<3x768xbf16>, vector<8x768xf32> -> vector<8x768xf32>
    %28 = arith.addf %22, %27 : vector<8x768xf32>
    %c0_32 = arith.constant 0 : index
    %c0_33 = arith.constant 0 : index
    %c20 = arith.constant 20 : index
    %29 = vector.load %arg1[%c0_32, %c0_33, %c20] : memref<1x3x896xbf16, #tpu.memory_space<vmem>>, vector<1x3x768xbf16>
    %30 = vector.shape_cast %29 : vector<1x3x768xbf16> to vector<3x768xbf16>
    %c0_34 = arith.constant 0 : index
    %c5 = arith.constant 5 : index
    %c0_35 = arith.constant 0 : index
    %c0_36 = arith.constant 0 : index
    %31 = vector.load %arg2[%c0_34, %c5, %c0_35, %c0_36] : memref<1x9x8x3xbf16, #tpu.memory_space<vmem>>, vector<1x1x8x3xbf16>
    %32 = vector.shape_cast %31 : vector<1x1x8x3xbf16> to vector<8x3xbf16>
    %cst_37 = arith.constant dense<0.000000e+00> : vector<8x768xf32>
    %33 = tpu.matmul %32, %30, %cst_37 {dimension_numbers = #tpu.dot_dimension_numbers<[1], [0], [0], [1], [0, 0, 1, 1], [], []>} : vector<8x3xbf16>, vector<3x768xbf16>, vector<8x768xf32> -> vector<8x768xf32>
    %34 = arith.addf %28, %33 : vector<8x768xf32>
    %c0_38 = arith.constant 0 : index
    %c0_39 = arith.constant 0 : index
    %c36 = arith.constant 36 : index
    %35 = vector.load %arg1[%c0_38, %c0_39, %c36] : memref<1x3x896xbf16, #tpu.memory_space<vmem>>, vector<1x3x768xbf16>
    %36 = vector.shape_cast %35 : vector<1x3x768xbf16> to vector<3x768xbf16>
    %c0_40 = arith.constant 0 : index
    %c6 = arith.constant 6 : index
    %c0_41 = arith.constant 0 : index
    %c0_42 = arith.constant 0 : index
    %37 = vector.load %arg2[%c0_40, %c6, %c0_41, %c0_42] : memref<1x9x8x3xbf16, #tpu.memory_space<vmem>>, vector<1x1x8x3xbf16>
    %38 = vector.shape_cast %37 : vector<1x1x8x3xbf16> to vector<8x3xbf16>
    %cst_43 = arith.constant dense<0.000000e+00> : vector<8x768xf32>
    %39 = tpu.matmul %38, %36, %cst_43 {dimension_numbers = #tpu.dot_dimension_numbers<[1], [0], [0], [1], [0, 0, 1, 1], [], []>} : vector<8x3xbf16>, vector<3x768xbf16>, vector<8x768xf32> -> vector<8x768xf32>
    %40 = arith.addf %34, %39 : vector<8x768xf32>
    %c0_44 = arith.constant 0 : index
    %c0_45 = arith.constant 0 : index
    %c37 = arith.constant 37 : index
    %41 = vector.load %arg1[%c0_44, %c0_45, %c37] : memref<1x3x896xbf16, #tpu.memory_space<vmem>>, vector<1x3x768xbf16>
    %42 = vector.shape_cast %41 : vector<1x3x768xbf16> to vector<3x768xbf16>
    %c0_46 = arith.constant 0 : index
    %c7 = arith.constant 7 : index
    %c0_47 = arith.constant 0 : index
    %c0_48 = arith.constant 0 : index
    %43 = vector.load %arg2[%c0_46, %c7, %c0_47, %c0_48] : memref<1x9x8x3xbf16, #tpu.memory_space<vmem>>, vector<1x1x8x3xbf16>
    %44 = vector.shape_cast %43 : vector<1x1x8x3xbf16> to vector<8x3xbf16>
    %cst_49 = arith.constant dense<0.000000e+00> : vector<8x768xf32>
    %45 = tpu.matmul %44, %42, %cst_49 {dimension_numbers = #tpu.dot_dimension_numbers<[1], [0], [0], [1], [0, 0, 1, 1], [], []>} : vector<8x3xbf16>, vector<3x768xbf16>, vector<8x768xf32> -> vector<8x768xf32>
    %46 = arith.addf %40, %45 : vector<8x768xf32>
    %c0_50 = arith.constant 0 : index
    %c0_51 = arith.constant 0 : index
    %c38 = arith.constant 38 : index
    %47 = vector.load %arg1[%c0_50, %c0_51, %c38] : memref<1x3x896xbf16, #tpu.memory_space<vmem>>, vector<1x3x768xbf16>
    %48 = vector.shape_cast %47 : vector<1x3x768xbf16> to vector<3x768xbf16>
    %c0_52 = arith.constant 0 : index
    %c8 = arith.constant 8 : index
    %c0_53 = arith.constant 0 : index
    %c0_54 = arith.constant 0 : index
    %49 = vector.load %arg2[%c0_52, %c8, %c0_53, %c0_54] : memref<1x9x8x3xbf16, #tpu.memory_space<vmem>>, vector<1x1x8x3xbf16>
    %50 = vector.shape_cast %49 : vector<1x1x8x3xbf16> to vector<8x3xbf16>
    %cst_55 = arith.constant dense<0.000000e+00> : vector<8x768xf32>
    %51 = tpu.matmul %50, %48, %cst_55 {dimension_numbers = #tpu.dot_dimension_numbers<[1], [0], [0], [1], [0, 0, 1, 1], [], []>} : vector<8x3xbf16>, vector<3x768xbf16>, vector<8x768xf32> -> vector<8x768xf32>
    %52 = arith.addf %46, %51 : vector<8x768xf32>
    %c0_56 = arith.constant 0 : index
    %c0_57 = arith.constant 0 : index
    %c0_58 = arith.constant 0 : index
    %53 = vector.load %arg3[%c0_56, %c0_57, %c0_58] : memref<1x8x1xf32, #tpu.memory_space<vmem>>, vector<1x8x1xf32>
    %54 = vector.shape_cast %53 : vector<1x8x1xf32> to vector<8x1xf32>
    %55 = vector.broadcast %54 : vector<8x1xf32> to vector<8x768xf32>
    %56 = arith.addf %52, %55 : vector<8x768xf32>
    %cst_59 = arith.constant 0.000000e+00 : f32
    %57 = vector.broadcast %cst_59 : f32 to vector<8x768xf32>
    %58 = arith.maximumf %56, %57 : vector<8x768xf32>
    %59 = arith.truncf %58 : vector<8x768xf32> to vector<8x768xbf16>
    %c0_60 = arith.constant 0 : index
    %c0_61 = arith.constant 0 : index
    %c0_62 = arith.constant 0 : index
    %60 = vector.load %arg4[%c0_60, %c0_61, %c0_62] : memref<1x8x768xbf16, #tpu.memory_space<vmem>>, vector<1x8x768xbf16>
    %61 = vector.shape_cast %60 : vector<1x8x768xbf16> to vector<8x768xbf16>
    %62 = vector.shape_cast %59 : vector<8x768xbf16> to vector<1x8x768xbf16>
    tpu.vector_store %arg4[%c0_60, %c0_61, %c0_62], %62 {strides = array<i32>} : memref<1x8x768xbf16, #tpu.memory_space<vmem>>, vector<1x8x768xbf16>,
    return
  }
  func.func @transform_0(%arg0: i32) -> (i32, i32, i32) {
    %c0_i32 = arith.constant 0 : i32
    %c0_i32_0 = arith.constant 0 : i32
    %c0_i32_1 = arith.constant 0 : i32
    return %arg0, %c0_i32, %c0_i32_0 : i32, i32, i32
  }
  func.func @transform_1(%arg0: i32) -> (i32, i32, i32, i32) {
    %c0_i32 = arith.constant 0 : i32
    %c0_i32_0 = arith.constant 0 : i32
    %c0_i32_1 = arith.constant 0 : i32
    %c0_i32_2 = arith.constant 0 : i32
    return %arg0, %c0_i32, %c0_i32_0, %c0_i32_1 : i32, i32, i32, i32
  }
  func.func @transform_2(%arg0: i32) -> (i32, i32, i32) {
    %c0_i32 = arith.constant 0 : i32
    %c0_i32_0 = arith.constant 0 : i32
    %c0_i32_1 = arith.constant 0 : i32
    return %arg0, %c0_i32, %c0_i32_0 : i32, i32, i32
  }
  func.func @transform_3(%arg0: i32) -> (i32, i32, i32) {
    %c0_i32 = arith.constant 0 : i32
    %c0_i32_0 = arith.constant 0 : i32
    %c0_i32_1 = arith.constant 0 : i32
    return %arg0, %c0_i32, %c0_i32_0 : i32, i32, i32
  }
}

</mosaic_0001>

<llo_original>
// kernel: tpu_custom_call.1
$region0: #{tpu_custom_call.1}
  #allocation0 [shape = 'u32[]', space=smem, size = 0x4, offset = 0x4, fixed_abs, tag = 'smem constant byte address 0x4 - core index']
  #allocation1 [shape = 'u32[144,128]{1,0:T(1,128)}', space=vmem, size = 0x12000, scoped, tag = 'internal scratch']
  %s0 = inlined_call_operand.vmem [shape: bf16[2,3,896], index: 0, kind: input, shape index: {}]
  %s1 = inlined_call_operand.vmem [shape: bf16[2,9,8,3], index: 1, kind: input, shape index: {}]
  %s2 = inlined_call_operand.vmem [shape: f32[2,8,1], index: 2, kind: input, shape index: {}]
  %s3 = inlined_call_operand.hbm [shape: bf16[2,8,768], index: 3, kind: output, shape index: {}]
  %s4 = sld [smem:[#allocation0]]
  $region45: #{tpu_custom_call.1} parent=0
    _
  %s6 = ssub.s32 1, %s4
  %s7 = scalar_select 0, %s6, %s4
  $region1: #{tpu_custom_call.1} parent=0
    #allocation2 [shape = 'u8[24576]{0}', space=vmem, size = 0x6000, scoped, tag = 'output window, operand 0']
    #allocation3 [shape = 's32[2]{0}', space=sflag, size = 0x8, scoped, tag = 'scoped memory for tpu_custom_call.1']
    %8 = vsyncpa [#allocation3], 0
    %s9 = scalar_lea.sflag [#allocation3], 1
    %10 = vsyncpa %s9, 0
    loop: start=0, step=1, limit=4
    $region2: #{tpu_custom_call.1} parent=1 // loop_pre_header
      _
    $region3: #{tpu_custom_call.1} parent=1 // loop_header
      %s12 = sphi 0, %s16
      %p13 = scmp.ge.s32.totalorder %s12, 4
      %s22 = sphi 0, %s24
      %s25 = sphi 0, %s22
      %s26 = sphi 0, %s25
      %s42 = sphi 0, %s26
      %s48 = sphi 0, %s50
      %s51 = sphi 0, %s48
      %s52 = sphi 0, %s51
      %s68 = sphi 0, %s52
      %s74 = sphi 0, %s76
      %s77 = sphi 0, %s74
      %s78 = sphi 0, %s77
      %s94 = sphi 0, %s78
      %s100 = sphi 0, %s102
      %s103 = sphi 0, %s100
      %s104 = sphi 0, %s103
      %s120 = sphi 0, %s104
    $region4: #{tpu_custom_call.1} parent=1 // loop_header_branch
      %15 = sbr.rel (%p13) target = $region8
    $region5: #{tpu_custom_call.1} parent=1 // loop_body
      %s17 = ssub.s32 %s12, 1
      %s18 = ssub.s32 %s12, 2
      %s19 = sadd.s32 %s12, 1
      %s20 = ssub.s32 %s12, %s19
      %p21 = scmp.eq.s32.totalorder %s20, 0
      %s23 = sadd.s32 %s22, 1
      %s24 = scalar_select %p21, %s22, %s23
      %p27 = pneg %p21
      %p28 = scmp.eq.s32.totalorder %s12, 1
      %p29 = por %p27, %p28
      %p30 = scmp.ne.s32.totalorder %s22, %s25
      %p31 = scmp.eq.s32.totalorder %s12, 0
      %p32 = por %p30, %p31
      %p33 = scmp.ne.s32.totalorder %s22, %s25
      %p34 = scmp.eq.s32.totalorder %s17, 1
      %p35 = por %p33, %p34
      %p36 = scmp.ne.s32.totalorder %s25, %s26
      %p37 = scmp.eq.s32.totalorder %s17, 0
      %p38 = por %p36, %p37
      %p39 = scmp.ne.s32.totalorder %s25, %s26
      %p40 = scmp.eq.s32.totalorder %s18, 1
      %p41 = por %p39, %p40
      %p43 = scmp.ne.s32.totalorder %s26, %s42
      %p44 = scmp.eq.s32.totalorder %s18, 0
      %p45 = por %p43, %p44
      %s46 = ssub.s32 %s12, %s19
      %p47 = scmp.eq.s32.totalorder %s46, 0
      %s49 = sadd.s32 %s48, 1
      %s50 = scalar_select %p47, %s48, %s49
      %p53 = pneg %p47
      %p54 = scmp.eq.s32.totalorder %s12, 1
      %p55 = por %p53, %p54
      %p56 = scmp.ne.s32.totalorder %s48, %s51
      %p57 = scmp.eq.s32.totalorder %s12, 0
      %p58 = por %p56, %p57
      %p59 = scmp.ne.s32.totalorder %s48, %s51
      %p60 = scmp.eq.s32.totalorder %s17, 1
      %p61 = por %p59, %p60
      %p62 = scmp.ne.s32.totalorder %s51, %s52
      %p63 = scmp.eq.s32.totalorder %s17, 0
      %p64 = por %p62, %p63
      %p65 = scmp.ne.s32.totalorder %s51, %s52
      %p66 = scmp.eq.s32.totalorder %s18, 1
      %p67 = por %p65, %p66
      %p69 = scmp.ne.s32.totalorder %s52, %s68
      %p70 = scmp.eq.s32.totalorder %s18, 0
      %p71 = por %p69, %p70
      %s72 = ssub.s32 %s12, %s19
      %p73 = scmp.eq.s32.totalorder %s72, 0
      %s75 = sadd.s32 %s74, 1
      %s76 = scalar_select %p73, %s74, %s75
      %p79 = pneg %p73
      %p80 = scmp.eq.s32.totalorder %s12, 1
      %p81 = por %p79, %p80
      %p82 = scmp.ne.s32.totalorder %s74, %s77
      %p83 = scmp.eq.s32.totalorder %s12, 0
      %p84 = por %p82, %p83
      %p85 = scmp.ne.s32.totalorder %s74, %s77
      %p86 = scmp.eq.s32.totalorder %s17, 1
      %p87 = por %p85, %p86
      %p88 = scmp.ne.s32.totalorder %s77, %s78
      %p89 = scmp.eq.s32.totalorder %s17, 0
      %p90 = por %p88, %p89
      %p91 = scmp.ne.s32.totalorder %s77, %s78
      %p92 = scmp.eq.s32.totalorder %s18, 1
      %p93 = por %p91, %p92
      %p95 = scmp.ne.s32.totalorder %s78, %s94
      %p96 = scmp.eq.s32.totalorder %s18, 0
      %p97 = por %p95, %p96
      %s98 = ssub.s32 %s12, %s19
      %p99 = scmp.eq.s32.totalorder %s98, 0
      %s101 = sadd.s32 %s100, 1
      %s102 = scalar_select %p99, %s100, %s101
      %p105 = pneg %p99
      %p106 = scmp.eq.s32.totalorder %s12, 1
      %p107 = por %p105, %p106
      %p108 = scmp.ne.s32.totalorder %s100, %s103
      %p109 = scmp.eq.s32.totalorder %s12, 0
      %p110 = por %p108, %p109
      %p111 = scmp.ne.s32.totalorder %s100, %s103
      %p112 = scmp.eq.s32.totalorder %s17, 1
      %p113 = por %p111, %p112
      %p114 = scmp.ne.s32.totalorder %s103, %s104
      %p115 = scmp.eq.s32.totalorder %s17, 0
      %p116 = por %p114, %p115
      %p117 = scmp.ne.s32.totalorder %s103, %s104
      %p118 = scmp.eq.s32.totalorder %s18, 1
      %p119 = por %p117, %p118
      %p121 = scmp.ne.s32.totalorder %s104, %s120
      %p122 = scmp.eq.s32.totalorder %s18, 0
      %p123 = por %p121, %p122
      %p124 = scmp.le.s32.totalorder 1, %s12
      %p125 = scmp.lt.s32.totalorder %s12, 3
      %p126 = pnand %p124, %p125
      %p127 = pneg %p126
      // Predicated region
      $region9: #{tpu_custom_call.1} parent=5 // pred_check
        _
      $region10: #{tpu_custom_call.1} parent=5 // pred_check_branch
        %129 = sbr.rel (%p126) target = $region12
      $region11: #{tpu_custom_call.1} parent=5 // pred_region
        %s130 = ssub.s32 %s12, 1
      $region12: #{tpu_custom_call.1} parent=5 // pred_fallthru
        _
      %p131 = scmp.lt.s32.totalorder %s12, 2
      // Predicated region
      $region13: #{tpu_custom_call.1} parent=5 // pred_check
        %p132 = pneg %p131
      $region14: #{tpu_custom_call.1} parent=5 // pred_check_branch
        %134 = sbr.rel (%p132) target = $region16
      $region15: #{tpu_custom_call.1} parent=5 // pred_region
        // Predicated region
        $region17: #{tpu_custom_call.1} parent=15 // pred_check
          %p135 = pneg %p32
        $region18: #{tpu_custom_call.1} parent=15 // pred_check_branch
          %137 = sbr.rel (%p135) target = $region20
        $region19: #{tpu_custom_call.1} parent=15 // pred_region
          %p138 = scmp.lt.s32.totalorder %s12, 1
          %s139 = scalar_select %p138, %s12, 1
          %s140 = smul.addr %s139, 7
          %s141 = smul.addr %s140, 2
          %s142 = scalar_lea.vmem %s0, %s141
        $region20: #{tpu_custom_call.1} parent=15 // pred_fallthru
          _
        // Predicated region
        $region21: #{tpu_custom_call.1} parent=15 // pred_check
          %p143 = pneg %p58
        $region22: #{tpu_custom_call.1} parent=15 // pred_check_branch
          %145 = sbr.rel (%p143) target = $region24
        $region23: #{tpu_custom_call.1} parent=15 // pred_region
          %p146 = scmp.lt.s32.totalorder %s12, 1
          %s147 = scalar_select %p146, %s12, 1
          %s148 = smul.addr %s147, 9
          %s149 = smul.addr %s148, 4
          %s150 = scalar_lea.vmem %s1, %s149
        $region24: #{tpu_custom_call.1} parent=15 // pred_fallthru
          _
        // Predicated region
        $region25: #{tpu_custom_call.1} parent=15 // pred_check
          %p151 = pneg %p84
        $region26: #{tpu_custom_call.1} parent=15 // pred_check_branch
          %153 = sbr.rel (%p151) target = $region28
        $region27: #{tpu_custom_call.1} parent=15 // pred_region
          %p154 = scmp.lt.s32.totalorder %s12, 1
          %s155 = scalar_select %p154, %s12, 1
          %s156 = smul.addr %s155, 8
          %s157 = scalar_lea.vmem %s2, %s156
        $region28: #{tpu_custom_call.1} parent=15 // pred_fallthru
          _
      $region16: #{tpu_custom_call.1} parent=5 // pred_fallthru
        _
      %p158 = scmp.le.s32.totalorder 1, %s12
      %p159 = scmp.lt.s32.totalorder %s12, 3
      %p160 = pnand %p158, %p159
      %p161 = pneg %p160
      // Predicated region
      $region29: #{tpu_custom_call.1} parent=5 // pred_check
        _
      $region30: #{tpu_custom_call.1} parent=5 // pred_check_branch
        %163 = sbr.rel (%p160) target = $region32
      $region31: #{tpu_custom_call.1} parent=5 // pred_region
        %s164 = ssub.s32 %s12, 1
        %p165 = scmp.lt.s32.totalorder %s17, 1
        %s166 = scalar_select %p165, %s17, 1
        %s167 = smul.addr %s166, 7
        %s168 = smul.addr %s167, 2
        %s169 = scalar_lea.vmem %s0, %s168
        %p170 = pneg %p38
        %p171 = pneg %p35
        %p172 = scmp.lt.s32.totalorder %s17, 1
        %s173 = scalar_select %p172, %s17, 1
        %s174 = smul.addr %s173, 9
        %s175 = smul.addr %s174, 4
        %s176 = scalar_lea.vmem %s1, %s175
        %p177 = pneg %p64
        %p178 = pneg %p61
        %p179 = scmp.lt.s32.totalorder %s17, 1
        %s180 = scalar_select %p179, %s17, 1
        %s181 = smul.addr %s180, 8
        %s182 = scalar_lea.vmem %s2, %s181
        %p183 = pneg %p90
        %p184 = pneg %p87
        %p185 = pneg %p116
        %p186 = pneg %p113
        %s187 = sand.u32 %s103, 1
        %s188 = scalar_lea.sflag [#allocation3], %s187
        %s189 = sand.u32 %s103, 1
        %s190 = smul.addr %s189, 24
        %s191 = scalar_lea.vmem [#allocation2], %s190
        %p192 = scmp.lt.s32.totalorder %s17, 1
        %s193 = scalar_select %p192, %s17, 1
        %s194 = smul.addr %s193, 7
        %s195 = smul.addr %s194, 2
        %s196 = scalar_lea.vmem %s0, %s195
        %p197 = scmp.lt.s32.totalorder %s17, 1
        %s198 = scalar_select %p197, %s17, 1
        %s199 = smul.addr %s198, 9
        %s200 = smul.addr %s199, 4
        %s201 = scalar_lea.vmem %s1, %s200
        %p202 = scmp.lt.s32.totalorder %s17, 1
        %s203 = scalar_select %p202, %s17, 1
        %s204 = smul.addr %s203, 8
        %s205 = scalar_lea.vmem %s2, %s204
        %v207 = vld [vmem:[%s196] sm:$0xff]
        %v208 = vld [vmem:[%s196 + $0x8] sm:$0xf]
        %v209 = vld [vmem:[%s201] sm:$0xf]
        %v210 = vld [vmem:[%s196 + $0x8] sm:$0x3f]
        %s211 = scalar_lea.vmem %s201, 4
        %v212 = vld [vmem:[%s211] sm:$0xf]
        %v215 = vcombine.high %v207, %v207
        %v217 = vunpack.c.l.s4 1983009808
        %v218 = vunpack.c.0.s8 %v217
        %v219 = vlaneseq
        %v220 = vshrl.u32 %v219, 7
        %v221 = vsub.s32 %v218, %v220
        %v222 = vrot.slane %v207, %v221
        %v224 = vunpack.c.l.s4 1983009808
        %v225 = vunpack.c.0.s8 %v224
        %v226 = vlaneseq
        %v227 = vshrl.u32 %v226, 7
        %v228 = vsub.s32 %v225, %v227
        %v229 = vrot.slane %v215, %v228
        %v230 = vcombine.high %v222, %v222
        %v231 = vcombine.high %v229, %v229
        %v232 = vcombine.high %v210, %v210
        %v234 = vunpack.c.l.s4 1983009808
        %v235 = vunpack.c.0.s8 %v234
        %v236 = vlaneseq
        %v237 = vshrl.u32 %v236, 7
        %v238 = vsub.s32 %v235, %v237
        %v239 = vrot.slane %v210, %v238
        %v241 = vunpack.c.l.s4 1983009808
        %v242 = vunpack.c.0.s8 %v241
        %v243 = vlaneseq
        %v244 = vshrl.u32 %v243, 7
        %v245 = vsub.s32 %v242, %v244
        %v246 = vrot.slane %v232, %v245
        %v247 = vcombine.high %v239, %v239
        %248 = vrot.lane.b32.xlu0 %v222, 127
        %v249 = vpop.permute.xlu0 %248
        %250 = vrot.lane.b32.xlu0 %v230, 127
        %v251 = vpop.permute.xlu0 %250
        %252 = vrot.lane.b32.xlu0 %v229, 127
        %v253 = vpop.permute.xlu0 %252
        %254 = vrot.lane.b32.xlu0 %v231, 127
        %v255 = vpop.permute.xlu0 %254
        %256 = vrot.lane.b32.xlu0 %v239, 127
        %v257 = vpop.permute.xlu0 %256
        %258 = vrot.lane.b32.xlu0 %v247, 127
        %v259 = vpop.permute.xlu0 %258
        %260 = vrot.lane.b32.xlu0 %v246, 127
        %v261 = vpop.permute.xlu0 %260
        %vm262 = vcmask 1039360
        %v263 = vsel %vm262, %v249, %v251
        %v264 = vsel %vm262, %v251, %v253
        %v265 = vsel %vm262, %v253, %v255
        %v266 = vsel %vm262, %v255, %v257
        %v267 = vsel %vm262, %v257, %v259
        %v268 = vsel %vm262, %v259, %v261
        %vm269 = vcmask 23552
        %v271 = vsel %vm269, %v212, 0
        %vm273 = vcmask 1040384
        %vm274 = vcmask 1041408
        %v275 = vsel %vm273, 4294967295, 65535
        %v276 = vsel %vm274, %v275, 0
        %v278 = vand.u32 %v263, %v276
        %v281 = vand.u32 %v264, %v276
        %v284 = vand.u32 %v265, %v276
        %v287 = vand.u32 %v266, %v276
        %v290 = vand.u32 %v267, %v276
        %v293 = vand.u32 %v268, %v276
        %295 = vmatprep.subr.bf16.mxu0 %v281
        %296 = vmatpush1.bf16.msra.mxu0 %v278
        %297 = vmatprep.subr.bf16.mxu0 0
        %298 = vmatpush1.bf16.msra.mxu0 0
        %299 = vmatprep.subr.bf16.mxu0 0
        %300 = vmatpush1.bf16.msra.mxu0 0
        %301 = vmatprep.subr.bf16.mxu0 0
        %302 = vmatpush1.bf16.msra.mxu0 0
        %303 = vmatprep.subr.bf16.mxu0 0
        %304 = vmatpush1.bf16.msra.mxu0 0
        %305 = vmatprep.subr.bf16.mxu0 0
        %306 = vmatpush1.bf16.msra.mxu0 0
        %307 = vmatprep.subr.bf16.mxu0 0
        %308 = vmatpush1.bf16.msra.mxu0 0
        %309 = vmatprep.subr.bf16.mxu0 0
        %310 = vmatpush1.bf16.msra.mxu0 0
        %311 = vmatprep.subr.bf16.mxu0 0
        %312 = vmatpush1.bf16.msra.mxu0 0
        %313 = vmatprep.subr.bf16.mxu0 0
        %314 = vmatpush1.bf16.msra.mxu0 0
        %315 = vmatprep.subr.bf16.mxu0 0
        %316 = vmatpush1.bf16.msra.mxu0 0
        %317 = vmatprep.subr.bf16.mxu0 0
        %318 = vmatpush1.bf16.msra.mxu0 0
        %319 = vmatprep.subr.bf16.mxu0 0
        %320 = vmatpush1.bf16.msra.mxu0 0
        %321 = vmatprep.subr.bf16.mxu0 0
        %322 = vmatpush1.bf16.msra.mxu0 0
        %323 = vmatprep.subr.bf16.mxu0 0
        %324 = vmatpush1.bf16.msra.mxu0 0
        %325 = vmatprep.subr.bf16.mxu0 0
        %326 = vmatpush1.bf16.msra.mxu0 0
        %327 = vmatprep.mubr.bf16.mxu0 0
        %328 = vmatmul.mubr.bf16.gmra.mrb[0].mxu0 %v271
        %v329 = vpop.f32.mrb[0].mxu0
        %v330 = vadd.f32 0.0, %v329
        %v331 = vpop.f32.mrb[0].mxu0
        %v332 = vadd.f32 0.0, %v331
        %v333 = vpop.f32.mrb[0].mxu0
        %v334 = vpop.f32.mrb[0].mxu0
        %335 = vdwg.mxu0
        %336 = vmatprep.subr.bf16.mxu0 %v287
        %337 = vmatpush1.bf16.msra.mxu0 %v284
        %338 = vmatprep.subr.bf16.mxu0 0
        %339 = vmatpush1.bf16.msra.mxu0 0
        %340 = vmatprep.subr.bf16.mxu0 0
        %341 = vmatpush1.bf16.msra.mxu0 0
        %342 = vmatprep.subr.bf16.mxu0 0
        %343 = vmatpush1.bf16.msra.mxu0 0
        %344 = vmatprep.subr.bf16.mxu0 0
        %345 = vmatpush1.bf16.msra.mxu0 0
        %346 = vmatprep.subr.bf16.mxu0 0
        %347 = vmatpush1.bf16.msra.mxu0 0
        %348 = vmatprep.subr.bf16.mxu0 0
        %349 = vmatpush1.bf16.msra.mxu0 0
        %350 = vmatprep.subr.bf16.mxu0 0
        %351 = vmatpush1.bf16.msra.mxu0 0
        %352 = vmatprep.subr.bf16.mxu0 0
        %353 = vmatpush1.bf16.msra.mxu0 0
        %354 = vmatprep.subr.bf16.mxu0 0
        %355 = vmatpush1.bf16.msra.mxu0 0
        %356 = vmatprep.subr.bf16.mxu0 0
        %357 = vmatpush1.bf16.msra.mxu0 0
        %358 = vmatprep.subr.bf16.mxu0 0
        %359 = vmatpush1.bf16.msra.mxu0 0
        %360 = vmatprep.subr.bf16.mxu0 0
        %361 = vmatpush1.bf16.msra.mxu0 0
        %362 = vmatprep.subr.bf16.mxu0 0
        %363 = vmatpush1.bf16.msra.mxu0 0
        %364 = vmatprep.subr.bf16.mxu0 0
        %365 = vmatpush1.bf16.msra.mxu0 0
        %366 = vmatprep.subr.bf16.mxu0 0
        %367 = vmatpush1.bf16.msra.mxu0 0
        %368 = vmatprep.mubr.bf16.mxu0 0
        %369 = vmatmul.mubr.bf16.gmra.mrb[0].mxu0 %v271
        %v370 = vpop.f32.mrb[0].mxu0
        %v371 = vadd.f32 0.0, %v370
        %v372 = vpop.f32.mrb[0].mxu0
        %v373 = vadd.f32 0.0, %v372
        %v374 = vpop.f32.mrb[0].mxu0
        %v375 = vpop.f32.mrb[0].mxu0
        %376 = vdwg.mxu0
        %377 = vmatprep.subr.bf16.mxu0 %v293
        %378 = vmatpush1.bf16.msra.mxu0 %v290
        %379 = vmatprep.subr.bf16.mxu0 0
        %380 = vmatpush1.bf16.msra.mxu0 0
        %381 = vmatprep.subr.bf16.mxu0 0
        %382 = vmatpush1.bf16.msra.mxu0 0
        %383 = vmatprep.subr.bf16.mxu0 0
        %384 = vmatpush1.bf16.msra.mxu0 0
        %385 = vmatprep.subr.bf16.mxu0 0
        %386 = vmatpush1.bf16.msra.mxu0 0
        %387 = vmatprep.subr.bf16.mxu0 0
        %388 = vmatpush1.bf16.msra.mxu0 0
        %389 = vmatprep.subr.bf16.mxu0 0
        %390 = vmatpush1.bf16.msra.mxu0 0
        %391 = vmatprep.subr.bf16.mxu0 0
        %392 = vmatpush1.bf16.msra.mxu0 0
        %393 = vmatprep.subr.bf16.mxu0 0
        %394 = vmatpush1.bf16.msra.mxu0 0
        %395 = vmatprep.subr.bf16.mxu0 0
        %396 = vmatpush1.bf16.msra.mxu0 0
        %397 = vmatprep.subr.bf16.mxu0 0
        %398 = vmatpush1.bf16.msra.mxu0 0
        %399 = vmatprep.subr.bf16.mxu0 0
        %400 = vmatpush1.bf16.msra.mxu0 0
        %401 = vmatprep.subr.bf16.mxu0 0
        %402 = vmatpush1.bf16.msra.mxu0 0
        %403 = vmatprep.subr.bf16.mxu0 0
        %404 = vmatpush1.bf16.msra.mxu0 0
        %405 = vmatprep.subr.bf16.mxu0 0
        %406 = vmatpush1.bf16.msra.mxu0 0
        %407 = vmatprep.subr.bf16.mxu0 0
        %408 = vmatpush1.bf16.msra.mxu0 0
        %409 = vmatprep.mubr.bf16.mxu0 0
        %410 = vmatmul.mubr.bf16.gmra.mrb[0].mxu0 %v271
        %v411 = vpop.f32.mrb[0].mxu0
        %v412 = vadd.f32 0.0, %v411
        %v413 = vpop.f32.mrb[0].mxu0
        %v414 = vadd.f32 0.0, %v413
        %v415 = vpop.f32.mrb[0].mxu0
        %v416 = vpop.f32.mrb[0].mxu0
        %417 = vdwg.mxu0
        %v420 = vunpack.c.l.s4 1983009808
        %v421 = vunpack.c.0.s8 %v420
        %v422 = vlaneseq
        %v423 = vshrl.u32 %v422, 7
        %v424 = vsub.s32 %v421, %v423
        %v425 = vrot.slane %v208, %v424
        %v426 = vcombine.high %v425, %v425
        %v428 = vsel %vm269, %v209, 0
        %v431 = vand.u32 %v222, %v276
        %v434 = vand.u32 %v230, %v276
        %v437 = vand.u32 %v229, %v276
        %v440 = vand.u32 %v231, %v276
        %v443 = vand.u32 %v425, %v276
        %v446 = vand.u32 %v426, %v276
        %448 = vmatprep.subr.bf16.mxu0 %v434
        %449 = vmatpush1.bf16.msra.mxu0 %v431
        %450 = vmatprep.subr.bf16.mxu0 0
        %451 = vmatpush1.bf16.msra.mxu0 0
        %452 = vmatprep.subr.bf16.mxu0 0
        %453 = vmatpush1.bf16.msra.mxu0 0
        %454 = vmatprep.subr.bf16.mxu0 0
        %455 = vmatpush1.bf16.msra.mxu0 0
        %456 = vmatprep.subr.bf16.mxu0 0
        %457 = vmatpush1.bf16.msra.mxu0 0
        %458 = vmatprep.subr.bf16.mxu0 0
        %459 = vmatpush1.bf16.msra.mxu0 0
        %460 = vmatprep.subr.bf16.mxu0 0
        %461 = vmatpush1.bf16.msra.mxu0 0
        %462 = vmatprep.subr.bf16.mxu0 0
        %463 = vmatpush1.bf16.msra.mxu0 0
        %464 = vmatprep.subr.bf16.mxu0 0
        %465 = vmatpush1.bf16.msra.mxu0 0
        %466 = vmatprep.subr.bf16.mxu0 0
        %467 = vmatpush1.bf16.msra.mxu0 0
        %468 = vmatprep.subr.bf16.mxu0 0
        %469 = vmatpush1.bf16.msra.mxu0 0
        %470 = vmatprep.subr.bf16.mxu0 0
        %471 = vmatpush1.bf16.msra.mxu0 0
        %472 = vmatprep.subr.bf16.mxu0 0
        %473 = vmatpush1.bf16.msra.mxu0 0
        %474 = vmatprep.subr.bf16.mxu0 0
        %475 = vmatpush1.bf16.msra.mxu0 0
        %476 = vmatprep.subr.bf16.mxu0 0
        %477 = vmatpush1.bf16.msra.mxu0 0
        %478 = vmatprep.subr.bf16.mxu0 0
        %479 = vmatpush1.bf16.msra.mxu0 0
        %480 = vmatprep.mubr.bf16.mxu0 0
        %481 = vmatmul.mubr.bf16.gmra.mrb[0].mxu0 %v428
        %v482 = vpop.f32.mrb[0].mxu0
        %v483 = vadd.f32 %v330, %v482
        %v484 = vpop.f32.mrb[0].mxu0
        %v485 = vadd.f32 %v332, %v484
        %v486 = vpop.f32.mrb[0].mxu0
        %v487 = vpop.f32.mrb[0].mxu0
        %488 = vdwg.mxu0
        %489 = vmatprep.subr.bf16.mxu0 %v440
        %490 = vmatpush1.bf16.msra.mxu0 %v437
        %491 = vmatprep.subr.bf16.mxu0 0
        %492 = vmatpush1.bf16.msra.mxu0 0
        %493 = vmatprep.subr.bf16.mxu0 0
        %494 = vmatpush1.bf16.msra.mxu0 0
        %495 = vmatprep.subr.bf16.mxu0 0
        %496 = vmatpush1.bf16.msra.mxu0 0
        %497 = vmatprep.subr.bf16.mxu0 0
        %498 = vmatpush1.bf16.msra.mxu0 0
        %499 = vmatprep.subr.bf16.mxu0 0
        %500 = vmatpush1.bf16.msra.mxu0 0
        %501 = vmatprep.subr.bf16.mxu0 0
        %502 = vmatpush1.bf16.msra.mxu0 0
        %503 = vmatprep.subr.bf16.mxu0 0
        %504 = vmatpush1.bf16.msra.mxu0 0
        %505 = vmatprep.subr.bf16.mxu0 0
        %506 = vmatpush1.bf16.msra.mxu0 0
        %507 = vmatprep.subr.bf16.mxu0 0
        %508 = vmatpush1.bf16.msra.mxu0 0
        %509 = vmatprep.subr.bf16.mxu0 0
        %510 = vmatpush1.bf16.msra.mxu0 0
        %511 = vmatprep.subr.bf16.mxu0 0
        %512 = vmatpush1.bf16.msra.mxu0 0
        %513 = vmatprep.subr.bf16.mxu0 0
        %514 = vmatpush1.bf16.msra.mxu0 0
        %515 = vmatprep.subr.bf16.mxu0 0
        %516 = vmatpush1.bf16.msra.mxu0 0
        %517 = vmatprep.subr.bf16.mxu0 0
        %518 = vmatpush1.bf16.msra.mxu0 0
        %519 = vmatprep.subr.bf16.mxu0 0
        %520 = vmatpush1.bf16.msra.mxu0 0
        %521 = vmatprep.mubr.bf16.mxu0 0
        %522 = vmatmul.mubr.bf16.gmra.mrb[0].mxu0 %v428
        %v523 = vpop.f32.mrb[0].mxu0
        %v524 = vadd.f32 %v371, %v523
        %v525 = vpop.f32.mrb[0].mxu0
        %v526 = vadd.f32 %v373, %v525
        %v527 = vpop.f32.mrb[0].mxu0
        %v528 = vpop.f32.mrb[0].mxu0
        %529 = vdwg.mxu0
        %530 = vmatprep.subr.bf16.mxu0 %v446
        %531 = vmatpush1.bf16.msra.mxu0 %v443
        %532 = vmatprep.subr.bf16.mxu0 0
        %533 = vmatpush1.bf16.msra.mxu0 0
        %534 = vmatprep.subr.bf16.mxu0 0
        %535 = vmatpush1.bf16.msra.mxu0 0
        %536 = vmatprep.subr.bf16.mxu0 0
        %537 = vmatpush1.bf16.msra.mxu0 0
        %538 = vmatprep.subr.bf16.mxu0 0
        %539 = vmatpush1.bf16.msra.mxu0 0
        %540 = vmatprep.subr.bf16.mxu0 0
        %541 = vmatpush1.bf16.msra.mxu0 0
        %542 = vmatprep.subr.bf16.mxu0 0
        %543 = vmatpush1.bf16.msra.mxu0 0
        %544 = vmatprep.subr.bf16.mxu0 0
        %545 = vmatpush1.bf16.msra.mxu0 0
        %546 = vmatprep.subr.bf16.mxu0 0
        %547 = vmatpush1.bf16.msra.mxu0 0
        %548 = vmatprep.subr.bf16.mxu0 0
        %549 = vmatpush1.bf16.msra.mxu0 0
        %550 = vmatprep.subr.bf16.mxu0 0
        %551 = vmatpush1.bf16.msra.mxu0 0
        %552 = vmatprep.subr.bf16.mxu0 0
        %553 = vmatpush1.bf16.msra.mxu0 0
        %554 = vmatprep.subr.bf16.mxu0 0
        %555 = vmatpush1.bf16.msra.mxu0 0
        %556 = vmatprep.subr.bf16.mxu0 0
        %557 = vmatpush1.bf16.msra.mxu0 0
        %558 = vmatprep.subr.bf16.mxu0 0
        %559 = vmatpush1.bf16.msra.mxu0 0
        %560 = vmatprep.subr.bf16.mxu0 0
        %561 = vmatpush1.bf16.msra.mxu0 0
        %562 = vmatprep.mubr.bf16.mxu0 0
        %563 = vmatmul.mubr.bf16.gmra.mrb[0].mxu0 %v428
        %v564 = vpop.f32.mrb[0].mxu0
        %v565 = vadd.f32 %v412, %v564
        %v566 = vpop.f32.mrb[0].mxu0
        %v567 = vadd.f32 %v414, %v566
        %v568 = vpop.f32.mrb[0].mxu0
        %v569 = vpop.f32.mrb[0].mxu0
        %570 = vdwg.mxu0
        %v571 = vld [vmem:[%s196] sm:$0xff]
        %v572 = vld [vmem:[%s196 + $0x8] sm:$0x3f]
        %s573 = scalar_lea.vmem %s201, 8
        %v574 = vld [vmem:[%s573] sm:$0xf]
        %v577 = vcombine.high %v571, %v571
        %v579 = vunpack.c.l.s4 1983009808
        %v580 = vunpack.c.0.s8 %v579
        %v581 = vlaneseq
        %v582 = vshrl.u32 %v581, 7
        %v583 = vsub.s32 %v580, %v582
        %v584 = vrot.slane %v571, %v583
        %v586 = vunpack.c.l.s4 1983009808
        %v587 = vunpack.c.0.s8 %v586
        %v588 = vlaneseq
        %v589 = vshrl.u32 %v588, 7
        %v590 = vsub.s32 %v587, %v589
        %v591 = vrot.slane %v577, %v590
        %v592 = vcombine.high %v584, %v584
        %v593 = vcombine.high %v591, %v591
        %v594 = vcombine.high %v572, %v572
        %v596 = vunpack.c.l.s4 1983009808
        %v597 = vunpack.c.0.s8 %v596
        %v598 = vlaneseq
        %v599 = vshrl.u32 %v598, 7
        %v600 = vsub.s32 %v597, %v599
        %v601 = vrot.slane %v572, %v600
        %v603 = vunpack.c.l.s4 1983009808
        %v604 = vunpack.c.0.s8 %v603
        %v605 = vlaneseq
        %v606 = vshrl.u32 %v605, 7
        %v607 = vsub.s32 %v604, %v606
        %v608 = vrot.slane %v594, %v607
        %v609 = vcombine.high %v601, %v601
        %610 = vrot.lane.b32.xlu0 %v584, 126
        %v611 = vpop.permute.xlu0 %610
        %612 = vrot.lane.b32.xlu0 %v592, 126
        %v613 = vpop.permute.xlu0 %612
        %614 = vrot.lane.b32.xlu0 %v591, 126
        %v615 = vpop.permute.xlu0 %614
        %616 = vrot.lane.b32.xlu0 %v593, 126
        %v617 = vpop.permute.xlu0 %616
        %618 = vrot.lane.b32.xlu0 %v601, 126
        %v619 = vpop.permute.xlu0 %618
        %620 = vrot.lane.b32.xlu0 %v609, 126
        %v621 = vpop.permute.xlu0 %620
        %622 = vrot.lane.b32.xlu0 %v608, 126
        %v623 = vpop.permute.xlu0 %622
        %vm624 = vcmask 1031168
        %v625 = vsel %vm624, %v611, %v613
        %v626 = vsel %vm624, %v613, %v615
        %v627 = vsel %vm624, %v615, %v617
        %v628 = vsel %vm624, %v617, %v619
        %v629 = vsel %vm624, %v619, %v621
        %v630 = vsel %vm624, %v621, %v623
        %v632 = vsel %vm269, %v574, 0
        %v635 = vand.u32 %v625, %v276
        %v638 = vand.u32 %v626, %v276
        %v641 = vand.u32 %v627, %v276
        %v644 = vand.u32 %v628, %v276
        %v647 = vand.u32 %v629, %v276
        %v650 = vand.u32 %v630, %v276
        %652 = vmatprep.subr.bf16.mxu0 %v638
        %653 = vmatpush1.bf16.msra.mxu0 %v635
        %654 = vmatprep.subr.bf16.mxu0 0
        %655 = vmatpush1.bf16.msra.mxu0 0
        %656 = vmatprep.subr.bf16.mxu0 0
        %657 = vmatpush1.bf16.msra.mxu0 0
        %658 = vmatprep.subr.bf16.mxu0 0
        %659 = vmatpush1.bf16.msra.mxu0 0
        %660 = vmatprep.subr.bf16.mxu0 0
        %661 = vmatpush1.bf16.msra.mxu0 0
        %662 = vmatprep.subr.bf16.mxu0 0
        %663 = vmatpush1.bf16.msra.mxu0 0
        %664 = vmatprep.subr.bf16.mxu0 0
        %665 = vmatpush1.bf16.msra.mxu0 0
        %666 = vmatprep.subr.bf16.mxu0 0
        %667 = vmatpush1.bf16.msra.mxu0 0
        %668 = vmatprep.subr.bf16.mxu0 0
        %669 = vmatpush1.bf16.msra.mxu0 0
        %670 = vmatprep.subr.bf16.mxu0 0
        %671 = vmatpush1.bf16.msra.mxu0 0
        %672 = vmatprep.subr.bf16.mxu0 0
        %673 = vmatpush1.bf16.msra.mxu0 0
        %674 = vmatprep.subr.bf16.mxu0 0
        %675 = vmatpush1.bf16.msra.mxu0 0
        %676 = vmatprep.subr.bf16.mxu0 0
        %677 = vmatpush1.bf16.msra.mxu0 0
        %678 = vmatprep.subr.bf16.mxu0 0
        %679 = vmatpush1.bf16.msra.mxu0 0
        %680 = vmatprep.subr.bf16.mxu0 0
        %681 = vmatpush1.bf16.msra.mxu0 0
        %682 = vmatprep.subr.bf16.mxu0 0
        %683 = vmatpush1.bf16.msra.mxu0 0
        %684 = vmatprep.mubr.bf16.mxu0 0
        %685 = vmatmul.mubr.bf16.gmra.mrb[0].mxu0 %v632
        %v686 = vpop.f32.mrb[0].mxu0
        %v687 = vadd.f32 0.0, %v686
        %v688 = vpop.f32.mrb[0].mxu0
        %v689 = vadd.f32 0.0, %v688
        %v690 = vpop.f32.mrb[0].mxu0
        %v691 = vpop.f32.mrb[0].mxu0
        %692 = vdwg.mxu0
        %693 = vmatprep.subr.bf16.mxu0 %v644
        %694 = vmatpush1.bf16.msra.mxu0 %v641
        %695 = vmatprep.subr.bf16.mxu0 0
        %696 = vmatpush1.bf16.msra.mxu0 0
        %697 = vmatprep.subr.bf16.mxu0 0
        %698 = vmatpush1.bf16.msra.mxu0 0
        %699 = vmatprep.subr.bf16.mxu0 0
        %700 = vmatpush1.bf16.msra.mxu0 0
        %701 = vmatprep.subr.bf16.mxu0 0
        %702 = vmatpush1.bf16.msra.mxu0 0
        %703 = vmatprep.subr.bf16.mxu0 0
        %704 = vmatpush1.bf16.msra.mxu0 0
        %705 = vmatprep.subr.bf16.mxu0 0
        %706 = vmatpush1.bf16.msra.mxu0 0
        %707 = vmatprep.subr.bf16.mxu0 0
        %708 = vmatpush1.bf16.msra.mxu0 0
        %709 = vmatprep.subr.bf16.mxu0 0
        %710 = vmatpush1.bf16.msra.mxu0 0
        %711 = vmatprep.subr.bf16.mxu0 0
        %712 = vmatpush1.bf16.msra.mxu0 0
        %713 = vmatprep.subr.bf16.mxu0 0
        %714 = vmatpush1.bf16.msra.mxu0 0
        %715 = vmatprep.subr.bf16.mxu0 0
        %716 = vmatpush1.bf16.msra.mxu0 0
        %717 = vmatprep.subr.bf16.mxu0 0
        %718 = vmatpush1.bf16.msra.mxu0 0
        %719 = vmatprep.subr.bf16.mxu0 0
        %720 = vmatpush1.bf16.msra.mxu0 0
        %721 = vmatprep.subr.bf16.mxu0 0
        %722 = vmatpush1.bf16.msra.mxu0 0
        %723 = vmatprep.subr.bf16.mxu0 0
        %724 = vmatpush1.bf16.msra.mxu0 0
        %725 = vmatprep.mubr.bf16.mxu0 0
        %726 = vmatmul.mubr.bf16.gmra.mrb[0].mxu0 %v632
        %v727 = vpop.f32.mrb[0].mxu0
        %v728 = vadd.f32 0.0, %v727
        %v729 = vpop.f32.mrb[0].mxu0
        %v730 = vadd.f32 0.0, %v729
        %v731 = vpop.f32.mrb[0].mxu0
        %v732 = vpop.f32.mrb[0].mxu0
        %733 = vdwg.mxu0
        %734 = vmatprep.subr.bf16.mxu0 %v650
        %735 = vmatpush1.bf16.msra.mxu0 %v647
        %736 = vmatprep.subr.bf16.mxu0 0
        %737 = vmatpush1.bf16.msra.mxu0 0
        %738 = vmatprep.subr.bf16.mxu0 0
        %739 = vmatpush1.bf16.msra.mxu0 0
        %740 = vmatprep.subr.bf16.mxu0 0
        %741 = vmatpush1.bf16.msra.mxu0 0
        %742 = vmatprep.subr.bf16.mxu0 0
        %743 = vmatpush1.bf16.msra.mxu0 0
        %744 = vmatprep.subr.bf16.mxu0 0
        %745 = vmatpush1.bf16.msra.mxu0 0
        %746 = vmatprep.subr.bf16.mxu0 0
        %747 = vmatpush1.bf16.msra.mxu0 0
        %748 = vmatprep.subr.bf16.mxu0 0
        %749 = vmatpush1.bf16.msra.mxu0 0
        %750 = vmatprep.subr.bf16.mxu0 0
        %751 = vmatpush1.bf16.msra.mxu0 0
        %752 = vmatprep.subr.bf16.mxu0 0
        %753 = vmatpush1.bf16.msra.mxu0 0
        %754 = vmatprep.subr.bf16.mxu0 0
        %755 = vmatpush1.bf16.msra.mxu0 0
        %756 = vmatprep.subr.bf16.mxu0 0
        %757 = vmatpush1.bf16.msra.mxu0 0
        %758 = vmatprep.subr.bf16.mxu0 0
        %759 = vmatpush1.bf16.msra.mxu0 0
        %760 = vmatprep.subr.bf16.mxu0 0
        %761 = vmatpush1.bf16.msra.mxu0 0
        %762 = vmatprep.subr.bf16.mxu0 0
        %763 = vmatpush1.bf16.msra.mxu0 0
        %764 = vmatprep.subr.bf16.mxu0 0
        %765 = vmatpush1.bf16.msra.mxu0 0
        %766 = vmatprep.mubr.bf16.mxu0 0
        %767 = vmatmul.mubr.bf16.gmra.mrb[0].mxu0 %v632
        %v768 = vpop.f32.mrb[0].mxu0
        %v769 = vadd.f32 0.0, %v768
        %v770 = vpop.f32.mrb[0].mxu0
        %v771 = vadd.f32 0.0, %v770
        %v772 = vpop.f32.mrb[0].mxu0
        %v773 = vpop.f32.mrb[0].mxu0
        %774 = vdwg.mxu0
        %v775 = vadd.f32 %v483, %v687
        %v776 = vadd.f32 %v485, %v689
        %v777 = vadd.f32 %v524, %v728
        %v778 = vadd.f32 %v526, %v730
        %v779 = vadd.f32 %v565, %v769
        %v780 = vadd.f32 %v567, %v771
        %v781 = vld [vmem:[%s196] sm:$0xff]
        %v782 = vld [vmem:[%s196 + $0x8] sm:$0x3f]
        %s783 = scalar_lea.vmem %s201, 12
        %v784 = vld [vmem:[%s783] sm:$0xf]
        %v787 = vcombine.high %v781, %v781
        %v789 = vunpack.c.l.s4 1983009808
        %v790 = vunpack.c.0.s8 %v789
        %v791 = vlaneseq
        %v792 = vshrl.u32 %v791, 7
        %v793 = vsub.s32 %v790, %v792
        %v794 = vrot.slane %v781, %v793
        %v796 = vunpack.c.l.s4 1983009808
        %v797 = vunpack.c.0.s8 %v796
        %v798 = vlaneseq
        %v799 = vshrl.u32 %v798, 7
        %v800 = vsub.s32 %v797, %v799
        %v801 = vrot.slane %v787, %v800
        %v802 = vcombine.high %v794, %v794
        %v803 = vcombine.high %v801, %v801
        %v804 = vcombine.high %v782, %v782
        %v806 = vunpack.c.l.s4 1983009808
        %v807 = vunpack.c.0.s8 %v806
        %v808 = vlaneseq
        %v809 = vshrl.u32 %v808, 7
        %v810 = vsub.s32 %v807, %v809
        %v811 = vrot.slane %v782, %v810
        %v813 = vunpack.c.l.s4 1983009808
        %v814 = vunpack.c.0.s8 %v813
        %v815 = vlaneseq
        %v816 = vshrl.u32 %v815, 7
        %v817 = vsub.s32 %v814, %v816
        %v818 = vrot.slane %v804, %v817
        %v819 = vcombine.high %v811, %v811
        %820 = vrot.lane.b32.xlu0 %v794, 110
        %v821 = vpop.permute.xlu0 %820
        %822 = vrot.lane.b32.xlu0 %v802, 110
        %v823 = vpop.permute.xlu0 %822
        %824 = vrot.lane.b32.xlu0 %v801, 110
        %v825 = vpop.permute.xlu0 %824
        %826 = vrot.lane.b32.xlu0 %v803, 110
        %v827 = vpop.permute.xlu0 %826
        %828 = vrot.lane.b32.xlu0 %v811, 110
        %v829 = vpop.permute.xlu0 %828
        %830 = vrot.lane.b32.xlu0 %v819, 110
        %v831 = vpop.permute.xlu0 %830
        %832 = vrot.lane.b32.xlu0 %v818, 110
        %v833 = vpop.permute.xlu0 %832
        %vm834 = vcmask 900096
        %v835 = vsel %vm834, %v821, %v823
        %v836 = vsel %vm834, %v823, %v825
        %v837 = vsel %vm834, %v825, %v827
        %v838 = vsel %vm834, %v827, %v829
        %v839 = vsel %vm834, %v829, %v831
        %v840 = vsel %vm834, %v831, %v833
        %v842 = vsel %vm269, %v784, 0
        %v845 = vand.u32 %v835, %v276
        %v848 = vand.u32 %v836, %v276
        %v851 = vand.u32 %v837, %v276
        %v854 = vand.u32 %v838, %v276
        %v857 = vand.u32 %v839, %v276
        %v860 = vand.u32 %v840, %v276
        %862 = vmatprep.subr.bf16.mxu0 %v848
        %863 = vmatpush1.bf16.msra.mxu0 %v845
        %864 = vmatprep.subr.bf16.mxu0 0
        %865 = vmatpush1.bf16.msra.mxu0 0
        %866 = vmatprep.subr.bf16.mxu0 0
        %867 = vmatpush1.bf16.msra.mxu0 0
        %868 = vmatprep.subr.bf16.mxu0 0
        %869 = vmatpush1.bf16.msra.mxu0 0
        %870 = vmatprep.subr.bf16.mxu0 0
        %871 = vmatpush1.bf16.msra.mxu0 0
        %872 = vmatprep.subr.bf16.mxu0 0
        %873 = vmatpush1.bf16.msra.mxu0 0
        %874 = vmatprep.subr.bf16.mxu0 0
        %875 = vmatpush1.bf16.msra.mxu0 0
        %876 = vmatprep.subr.bf16.mxu0 0
        %877 = vmatpush1.bf16.msra.mxu0 0
        %878 = vmatprep.subr.bf16.mxu0 0
        %879 = vmatpush1.bf16.msra.mxu0 0
        %880 = vmatprep.subr.bf16.mxu0 0
        %881 = vmatpush1.bf16.msra.mxu0 0
        %882 = vmatprep.subr.bf16.mxu0 0
        %883 = vmatpush1.bf16.msra.mxu0 0
        %884 = vmatprep.subr.bf16.mxu0 0
        %885 = vmatpush1.bf16.msra.mxu0 0
        %886 = vmatprep.subr.bf16.mxu0 0
        %887 = vmatpush1.bf16.msra.mxu0 0
        %888 = vmatprep.subr.bf16.mxu0 0
        %889 = vmatpush1.bf16.msra.mxu0 0
        %890 = vmatprep.subr.bf16.mxu0 0
        %891 = vmatpush1.bf16.msra.mxu0 0
        %892 = vmatprep.subr.bf16.mxu0 0
        %893 = vmatpush1.bf16.msra.mxu0 0
        %894 = vmatprep.mubr.bf16.mxu0 0
        %895 = vmatmul.mubr.bf16.gmra.mrb[0].mxu0 %v842
        %v896 = vpop.f32.mrb[0].mxu0
        %v897 = vadd.f32 0.0, %v896
        %v898 = vpop.f32.mrb[0].mxu0
        %v899 = vadd.f32 0.0, %v898
        %v900 = vpop.f32.mrb[0].mxu0
        %v901 = vpop.f32.mrb[0].mxu0
        %902 = vdwg.mxu0
        %903 = vmatprep.subr.bf16.mxu0 %v854
        %904 = vmatpush1.bf16.msra.mxu0 %v851
        %905 = vmatprep.subr.bf16.mxu0 0
        %906 = vmatpush1.bf16.msra.mxu0 0
        %907 = vmatprep.subr.bf16.mxu0 0
        %908 = vmatpush1.bf16.msra.mxu0 0
        %909 = vmatprep.subr.bf16.mxu0 0
        %910 = vmatpush1.bf16.msra.mxu0 0
        %911 = vmatprep.subr.bf16.mxu0 0
        %912 = vmatpush1.bf16.msra.mxu0 0
        %913 = vmatprep.subr.bf16.mxu0 0
        %914 = vmatpush1.bf16.msra.mxu0 0
        %915 = vmatprep.subr.bf16.mxu0 0
        %916 = vmatpush1.bf16.msra.mxu0 0
        %917 = vmatprep.subr.bf16.mxu0 0
        %918 = vmatpush1.bf16.msra.mxu0 0
        %919 = vmatprep.subr.bf16.mxu0 0
        %920 = vmatpush1.bf16.msra.mxu0 0
        %921 = vmatprep.subr.bf16.mxu0 0
        %922 = vmatpush1.bf16.msra.mxu0 0
        %923 = vmatprep.subr.bf16.mxu0 0
        %924 = vmatpush1.bf16.msra.mxu0 0
        %925 = vmatprep.subr.bf16.mxu0 0
        %926 = vmatpush1.bf16.msra.mxu0 0
        %927 = vmatprep.subr.bf16.mxu0 0
        %928 = vmatpush1.bf16.msra.mxu0 0
        %929 = vmatprep.subr.bf16.mxu0 0
        %930 = vmatpush1.bf16.msra.mxu0 0
        %931 = vmatprep.subr.bf16.mxu0 0
        %932 = vmatpush1.bf16.msra.mxu0 0
        %933 = vmatprep.subr.bf16.mxu0 0
        %934 = vmatpush1.bf16.msra.mxu0 0
        %935 = vmatprep.mubr.bf16.mxu0 0
        %936 = vmatmul.mubr.bf16.gmra.mrb[0].mxu0 %v842
        %v937 = vpop.f32.mrb[0].mxu0
        %v938 = vadd.f32 0.0, %v937
        %v939 = vpop.f32.mrb[0].mxu0
        %v940 = vadd.f32 0.0, %v939
        %v941 = vpop.f32.mrb[0].mxu0
        %v942 = vpop.f32.mrb[0].mxu0
        %943 = vdwg.mxu0
        %944 = vmatprep.subr.bf16.mxu0 %v860
        %945 = vmatpush1.bf16.msra.mxu0 %v857
        %946 = vmatprep.subr.bf16.mxu0 0
        %947 = vmatpush1.bf16.msra.mxu0 0
        %948 = vmatprep.subr.bf16.mxu0 0
        %949 = vmatpush1.bf16.msra.mxu0 0
        %950 = vmatprep.subr.bf16.mxu0 0
        %951 = vmatpush1.bf16.msra.mxu0 0
        %952 = vmatprep.subr.bf16.mxu0 0
        %953 = vmatpush1.bf16.msra.mxu0 0
        %954 = vmatprep.subr.bf16.mxu0 0
        %955 = vmatpush1.bf16.msra.mxu0 0
        %956 = vmatprep.subr.bf16.mxu0 0
        %957 = vmatpush1.bf16.msra.mxu0 0
        %958 = vmatprep.subr.bf16.mxu0 0
        %959 = vmatpush1.bf16.msra.mxu0 0
        %960 = vmatprep.subr.bf16.mxu0 0
        %961 = vmatpush1.bf16.msra.mxu0 0
        %962 = vmatprep.subr.bf16.mxu0 0
        %963 = vmatpush1.bf16.msra.mxu0 0
        %964 = vmatprep.subr.bf16.mxu0 0
        %965 = vmatpush1.bf16.msra.mxu0 0
        %966 = vmatprep.subr.bf16.mxu0 0
        %967 = vmatpush1.bf16.msra.mxu0 0
        %968 = vmatprep.subr.bf16.mxu0 0
        %969 = vmatpush1.bf16.msra.mxu0 0
        %970 = vmatprep.subr.bf16.mxu0 0
        %971 = vmatpush1.bf16.msra.mxu0 0
        %972 = vmatprep.subr.bf16.mxu0 0
        %973 = vmatpush1.bf16.msra.mxu0 0
        %974 = vmatprep.subr.bf16.mxu0 0
        %975 = vmatpush1.bf16.msra.mxu0 0
        %976 = vmatprep.mubr.bf16.mxu0 0
        %977 = vmatmul.mubr.bf16.gmra.mrb[0].mxu0 %v842
        %v978 = vpop.f32.mrb[0].mxu0
        %v979 = vadd.f32 0.0, %v978
        %v980 = vpop.f32.mrb[0].mxu0
        %v981 = vadd.f32 0.0, %v980
        %v982 = vpop.f32.mrb[0].mxu0
        %v983 = vpop.f32.mrb[0].mxu0
        %984 = vdwg.mxu0
        %v985 = vadd.f32 %v775, %v897
        %v986 = vadd.f32 %v776, %v899
        %v987 = vadd.f32 %v777, %v938
        %v988 = vadd.f32 %v778, %v940
        %v989 = vadd.f32 %v779, %v979
        %v990 = vadd.f32 %v780, %v981
        %v991 = vld [vmem:[%s196] sm:$0xff]
        %v992 = vld [vmem:[%s196 + $0x8] sm:$0x3f]
        %s993 = scalar_lea.vmem %s201, 16
        %v994 = vld [vmem:[%s993] sm:$0xf]
        %v997 = vcombine.high %v991, %v991
        %v999 = vunpack.c.l.s4 1983009808
        %v1000 = vunpack.c.0.s8 %v999
        %v1001 = vlaneseq
        %v1002 = vshrl.u32 %v1001, 7
        %v1003 = vsub.s32 %v1000, %v1002
        %v1004 = vrot.slane %v991, %v1003
        %v1006 = vunpack.c.l.s4 1983009808
        %v1007 = vunpack.c.0.s8 %v1006
        %v1008 = vlaneseq
        %v1009 = vshrl.u32 %v1008, 7
        %v1010 = vsub.s32 %v1007, %v1009
        %v1011 = vrot.slane %v997, %v1010
        %v1012 = vcombine.high %v1004, %v1004
        %v1013 = vcombine.high %v1011, %v1011
        %v1014 = vcombine.high %v992, %v992
        %v1016 = vunpack.c.l.s4 1983009808
        %v1017 = vunpack.c.0.s8 %v1016
        %v1018 = vlaneseq
        %v1019 = vshrl.u32 %v1018, 7
        %v1020 = vsub.s32 %v1017, %v1019
        %v1021 = vrot.slane %v992, %v1020
        %v1023 = vunpack.c.l.s4 1983009808
        %v1024 = vunpack.c.0.s8 %v1023
        %v1025 = vlaneseq
        %v1026 = vshrl.u32 %v1025, 7
        %v1027 = vsub.s32 %v1024, %v1026
        %v1028 = vrot.slane %v1014, %v1027
        %v1029 = vcombine.high %v1021, %v1021
        %1030 = vrot.lane.b32.xlu0 %v1004, 109
        %v1031 = vpop.permute.xlu0 %1030
        %1032 = vrot.lane.b32.xlu0 %v1012, 109
        %v1033 = vpop.permute.xlu0 %1032
        %1034 = vrot.lane.b32.xlu0 %v1011, 109
        %v1035 = vpop.permute.xlu0 %1034
        %1036 = vrot.lane.b32.xlu0 %v1013, 109
        %v1037 = vpop.permute.xlu0 %1036
        %1038 = vrot.lane.b32.xlu0 %v1021, 109
        %v1039 = vpop.permute.xlu0 %1038
        %1040 = vrot.lane.b32.xlu0 %v1029, 109
        %v1041 = vpop.permute.xlu0 %1040
        %1042 = vrot.lane.b32.xlu0 %v1028, 109
        %v1043 = vpop.permute.xlu0 %1042
        %vm1044 = vcmask 891904
        %v1045 = vsel %vm1044, %v1031, %v1033
        %v1046 = vsel %vm1044, %v1033, %v1035
        %v1047 = vsel %vm1044, %v1035, %v1037
        %v1048 = vsel %vm1044, %v1037, %v1039
        %v1049 = vsel %vm1044, %v1039, %v1041
        %v1050 = vsel %vm1044, %v1041, %v1043
        %v1052 = vsel %vm269, %v994, 0
        %v1055 = vand.u32 %v1045, %v276
        %v1058 = vand.u32 %v1046, %v276
        %v1061 = vand.u32 %v1047, %v276
        %v1064 = vand.u32 %v1048, %v276
        %v1067 = vand.u32 %v1049, %v276
        %v1070 = vand.u32 %v1050, %v276
        %1072 = vmatprep.subr.bf16.mxu0 %v1058
        %1073 = vmatpush1.bf16.msra.mxu0 %v1055
        %1074 = vmatprep.subr.bf16.mxu0 0
        %1075 = vmatpush1.bf16.msra.mxu0 0
        %1076 = vmatprep.subr.bf16.mxu0 0
        %1077 = vmatpush1.bf16.msra.mxu0 0
        %1078 = vmatprep.subr.bf16.mxu0 0
        %1079 = vmatpush1.bf16.msra.mxu0 0
        %1080 = vmatprep.subr.bf16.mxu0 0
        %1081 = vmatpush1.bf16.msra.mxu0 0
        %1082 = vmatprep.subr.bf16.mxu0 0
        %1083 = vmatpush1.bf16.msra.mxu0 0
        %1084 = vmatprep.subr.bf16.mxu0 0
        %1085 = vmatpush1.bf16.msra.mxu0 0
        %1086 = vmatprep.subr.bf16.mxu0 0
        %1087 = vmatpush1.bf16.msra.mxu0 0
        %1088 = vmatprep.subr.bf16.mxu0 0
        %1089 = vmatpush1.bf16.msra.mxu0 0
        %1090 = vmatprep.subr.bf16.mxu0 0
        %1091 = vmatpush1.bf16.msra.mxu0 0
        %1092 = vmatprep.subr.bf16.mxu0 0
        %1093 = vmatpush1.bf16.msra.mxu0 0
        %1094 = vmatprep.subr.bf16.mxu0 0
        %1095 = vmatpush1.bf16.msra.mxu0 0
        %1096 = vmatprep.subr.bf16.mxu0 0
        %1097 = vmatpush1.bf16.msra.mxu0 0
        %1098 = vmatprep.subr.bf16.mxu0 0
        %1099 = vmatpush1.bf16.msra.mxu0 0
        %1100 = vmatprep.subr.bf16.mxu0 0
        %1101 = vmatpush1.bf16.msra.mxu0 0
        %1102 = vmatprep.subr.bf16.mxu0 0
        %1103 = vmatpush1.bf16.msra.mxu0 0
        %1104 = vmatprep.mubr.bf16.mxu0 0
        %1105 = vmatmul.mubr.bf16.gmra.mrb[0].mxu0 %v1052
        %v1106 = vpop.f32.mrb[0].mxu0
        %v1107 = vadd.f32 0.0, %v1106
        %v1108 = vpop.f32.mrb[0].mxu0
        %v1109 = vadd.f32 0.0, %v1108
        %v1110 = vpop.f32.mrb[0].mxu0
        %v1111 = vpop.f32.mrb[0].mxu0
        %1112 = vdwg.mxu0
        %1113 = vmatprep.subr.bf16.mxu0 %v1064
        %1114 = vmatpush1.bf16.msra.mxu0 %v1061
        %1115 = vmatprep.subr.bf16.mxu0 0
        %1116 = vmatpush1.bf16.msra.mxu0 0
        %1117 = vmatprep.subr.bf16.mxu0 0
        %1118 = vmatpush1.bf16.msra.mxu0 0
        %1119 = vmatprep.subr.bf16.mxu0 0
        %1120 = vmatpush1.bf16.msra.mxu0 0
        %1121 = vmatprep.subr.bf16.mxu0 0
        %1122 = vmatpush1.bf16.msra.mxu0 0
        %1123 = vmatprep.subr.bf16.mxu0 0
        %1124 = vmatpush1.bf16.msra.mxu0 0
        %1125 = vmatprep.subr.bf16.mxu0 0
        %1126 = vmatpush1.bf16.msra.mxu0 0
        %1127 = vmatprep.subr.bf16.mxu0 0
        %1128 = vmatpush1.bf16.msra.mxu0 0
        %1129 = vmatprep.subr.bf16.mxu0 0
        %1130 = vmatpush1.bf16.msra.mxu0 0
        %1131 = vmatprep.subr.bf16.mxu0 0
        %1132 = vmatpush1.bf16.msra.mxu0 0
        %1133 = vmatprep.subr.bf16.mxu0 0
        %1134 = vmatpush1.bf16.msra.mxu0 0
        %1135 = vmatprep.subr.bf16.mxu0 0
        %1136 = vmatpush1.bf16.msra.mxu0 0
        %1137 = vmatprep.subr.bf16.mxu0 0
        %1138 = vmatpush1.bf16.msra.mxu0 0
        %1139 = vmatprep.subr.bf16.mxu0 0
        %1140 = vmatpush1.bf16.msra.mxu0 0
        %1141 = vmatprep.subr.bf16.mxu0 0
        %1142 = vmatpush1.bf16.msra.mxu0 0
        %1143 = vmatprep.subr.bf16.mxu0 0
        %1144 = vmatpush1.bf16.msra.mxu0 0
        %1145 = vmatprep.mubr.bf16.mxu0 0
        %1146 = vmatmul.mubr.bf16.gmra.mrb[0].mxu0 %v1052
        %v1147 = vpop.f32.mrb[0].mxu0
        %v1148 = vadd.f32 0.0, %v1147
        %v1149 = vpop.f32.mrb[0].mxu0
        %v1150 = vadd.f32 0.0, %v1149
        %v1151 = vpop.f32.mrb[0].mxu0
        %v1152 = vpop.f32.mrb[0].mxu0
        %1153 = vdwg.mxu0
        %1154 = vmatprep.subr.bf16.mxu0 %v1070
        %1155 = vmatpush1.bf16.msra.mxu0 %v1067
        %1156 = vmatprep.subr.bf16.mxu0 0
        %1157 = vmatpush1.bf16.msra.mxu0 0
        %1158 = vmatprep.subr.bf16.mxu0 0
        %1159 = vmatpush1.bf16.msra.mxu0 0
        %1160 = vmatprep.subr.bf16.mxu0 0
        %1161 = vmatpush1.bf16.msra.mxu0 0
        %1162 = vmatprep.subr.bf16.mxu0 0
        %1163 = vmatpush1.bf16.msra.mxu0 0
        %1164 = vmatprep.subr.bf16.mxu0 0
        %1165 = vmatpush1.bf16.msra.mxu0 0
        %1166 = vmatprep.subr.bf16.mxu0 0
        %1167 = vmatpush1.bf16.msra.mxu0 0
        %1168 = vmatprep.subr.bf16.mxu0 0
        %1169 = vmatpush1.bf16.msra.mxu0 0
        %1170 = vmatprep.subr.bf16.mxu0 0
        %1171 = vmatpush1.bf16.msra.mxu0 0
        %1172 = vmatprep.subr.bf16.mxu0 0
        %1173 = vmatpush1.bf16.msra.mxu0 0
        %1174 = vmatprep.subr.bf16.mxu0 0
        %1175 = vmatpush1.bf16.msra.mxu0 0
        %1176 = vmatprep.subr.bf16.mxu0 0
        %1177 = vmatpush1.bf16.msra.mxu0 0
        %1178 = vmatprep.subr.bf16.mxu0 0
        %1179 = vmatpush1.bf16.msra.mxu0 0
        %1180 = vmatprep.subr.bf16.mxu0 0
        %1181 = vmatpush1.bf16.msra.mxu0 0
        %1182 = vmatprep.subr.bf16.mxu0 0
        %1183 = vmatpush1.bf16.msra.mxu0 0
        %1184 = vmatprep.subr.bf16.mxu0 0
        %1185 = vmatpush1.bf16.msra.mxu0 0
        %1186 = vmatprep.mubr.bf16.mxu0 0
        %1187 = vmatmul.mubr.bf16.gmra.mrb[0].mxu0 %v1052
        %v1188 = vpop.f32.mrb[0].mxu0
        %v1189 = vadd.f32 0.0, %v1188
        %v1190 = vpop.f32.mrb[0].mxu0
        %v1191 = vadd.f32 0.0, %v1190
        %v1192 = vpop.f32.mrb[0].mxu0
        %v1193 = vpop.f32.mrb[0].mxu0
        %1194 = vdwg.mxu0
        %v1195 = vadd.f32 %v985, %v1107
        %v1196 = vadd.f32 %v986, %v1109
        %v1197 = vadd.f32 %v987, %v1148
        %v1198 = vadd.f32 %v988, %v1150
        %v1199 = vadd.f32 %v989, %v1189
        %v1200 = vadd.f32 %v990, %v1191
        %v1201 = vld [vmem:[%s196] sm:$0xff]
        %v1202 = vld [vmem:[%s196 + $0x8] sm:$0x3f]
        %s1203 = scalar_lea.vmem %s201, 20
        %v1204 = vld [vmem:[%s1203] sm:$0xf]
        %v1207 = vcombine.high %v1201, %v1201
        %v1209 = vunpack.c.l.s4 1983009808
        %v1210 = vunpack.c.0.s8 %v1209
        %v1211 = vlaneseq
        %v1212 = vshrl.u32 %v1211, 7
        %v1213 = vsub.s32 %v1210, %v1212
        %v1214 = vrot.slane %v1201, %v1213
        %v1216 = vunpack.c.l.s4 1983009808
        %v1217 = vunpack.c.0.s8 %v1216
        %v1218 = vlaneseq
        %v1219 = vshrl.u32 %v1218, 7
        %v1220 = vsub.s32 %v1217, %v1219
        %v1221 = vrot.slane %v1207, %v1220
        %v1222 = vcombine.high %v1214, %v1214
        %v1223 = vcombine.high %v1221, %v1221
        %v1224 = vcombine.high %v1202, %v1202
        %v1226 = vunpack.c.l.s4 1983009808
        %v1227 = vunpack.c.0.s8 %v1226
        %v1228 = vlaneseq
        %v1229 = vshrl.u32 %v1228, 7
        %v1230 = vsub.s32 %v1227, %v1229
        %v1231 = vrot.slane %v1202, %v1230
        %v1233 = vunpack.c.l.s4 1983009808
        %v1234 = vunpack.c.0.s8 %v1233
        %v1235 = vlaneseq
        %v1236 = vshrl.u32 %v1235, 7
        %v1237 = vsub.s32 %v1234, %v1236
        %v1238 = vrot.slane %v1224, %v1237
        %v1239 = vcombine.high %v1231, %v1231
        %1240 = vrot.lane.b32.xlu0 %v1214, 108
        %v1241 = vpop.permute.xlu0 %1240
        %1242 = vrot.lane.b32.xlu0 %v1222, 108
        %v1243 = vpop.permute.xlu0 %1242
        %1244 = vrot.lane.b32.xlu0 %v1221, 108
        %v1245 = vpop.permute.xlu0 %1244
        %1246 = vrot.lane.b32.xlu0 %v1223, 108
        %v1247 = vpop.permute.xlu0 %1246
        %1248 = vrot.lane.b32.xlu0 %v1231, 108
        %v1249 = vpop.permute.xlu0 %1248
        %1250 = vrot.lane.b32.xlu0 %v1239, 108
        %v1251 = vpop.permute.xlu0 %1250
        %1252 = vrot.lane.b32.xlu0 %v1238, 108
        %v1253 = vpop.permute.xlu0 %1252
        %vm1254 = vcmask 883712
        %v1255 = vsel %vm1254, %v1241, %v1243
        %v1256 = vsel %vm1254, %v1243, %v1245
        %v1257 = vsel %vm1254, %v1245, %v1247
        %v1258 = vsel %vm1254, %v1247, %v1249
        %v1259 = vsel %vm1254, %v1249, %v1251
        %v1260 = vsel %vm1254, %v1251, %v1253
        %v1262 = vsel %vm269, %v1204, 0
        %v1265 = vand.u32 %v1255, %v276
        %v1268 = vand.u32 %v1256, %v276
        %v1271 = vand.u32 %v1257, %v276
        %v1274 = vand.u32 %v1258, %v276
        %v1277 = vand.u32 %v1259, %v276
        %v1280 = vand.u32 %v1260, %v276
        %1282 = vmatprep.subr.bf16.mxu0 %v1268
        %1283 = vmatpush1.bf16.msra.mxu0 %v1265
        %1284 = vmatprep.subr.bf16.mxu0 0
        %1285 = vmatpush1.bf16.msra.mxu0 0
        %1286 = vmatprep.subr.bf16.mxu0 0
        %1287 = vmatpush1.bf16.msra.mxu0 0
        %1288 = vmatprep.subr.bf16.mxu0 0
        %1289 = vmatpush1.bf16.msra.mxu0 0
        %1290 = vmatprep.subr.bf16.mxu0 0
        %1291 = vmatpush1.bf16.msra.mxu0 0
        %1292 = vmatprep.subr.bf16.mxu0 0
        %1293 = vmatpush1.bf16.msra.mxu0 0
        %1294 = vmatprep.subr.bf16.mxu0 0
        %1295 = vmatpush1.bf16.msra.mxu0 0
        %1296 = vmatprep.subr.bf16.mxu0 0
        %1297 = vmatpush1.bf16.msra.mxu0 0
        %1298 = vmatprep.subr.bf16.mxu0 0
        %1299 = vmatpush1.bf16.msra.mxu0 0
        %1300 = vmatprep.subr.bf16.mxu0 0
        %1301 = vmatpush1.bf16.msra.mxu0 0
        %1302 = vmatprep.subr.bf16.mxu0 0
        %1303 = vmatpush1.bf16.msra.mxu0 0
        %1304 = vmatprep.subr.bf16.mxu0 0
        %1305 = vmatpush1.bf16.msra.mxu0 0
        %1306 = vmatprep.subr.bf16.mxu0 0
        %1307 = vmatpush1.bf16.msra.mxu0 0
        %1308 = vmatprep.subr.bf16.mxu0 0
        %1309 = vmatpush1.bf16.msra.mxu0 0
        %1310 = vmatprep.subr.bf16.mxu0 0
        %1311 = vmatpush1.bf16.msra.mxu0 0
        %1312 = vmatprep.subr.bf16.mxu0 0
        %1313 = vmatpush1.bf16.msra.mxu0 0
        %1314 = vmatprep.mubr.bf16.mxu0 0
        %1315 = vmatmul.mubr.bf16.gmra.mrb[0].mxu0 %v1262
        %v1316 = vpop.f32.mrb[0].mxu0
        %v1317 = vadd.f32 0.0, %v1316
        %v1318 = vpop.f32.mrb[0].mxu0
        %v1319 = vadd.f32 0.0, %v1318
        %v1320 = vpop.f32.mrb[0].mxu0
        %v1321 = vpop.f32.mrb[0].mxu0
        %1322 = vdwg.mxu0
        %1323 = vmatprep.subr.bf16.mxu0 %v1274
        %1324 = vmatpush1.bf16.msra.mxu0 %v1271
        %1325 = vmatprep.subr.bf16.mxu0 0
        %1326 = vmatpush1.bf16.msra.mxu0 0
        %1327 = vmatprep.subr.bf16.mxu0 0
        %1328 = vmatpush1.bf16.msra.mxu0 0
        %1329 = vmatprep.subr.bf16.mxu0 0
        %1330 = vmatpush1.bf16.msra.mxu0 0
        %1331 = vmatprep.subr.bf16.mxu0 0
        %1332 = vmatpush1.bf16.msra.mxu0 0
        %1333 = vmatprep.subr.bf16.mxu0 0
        %1334 = vmatpush1.bf16.msra.mxu0 0
        %1335 = vmatprep.subr.bf16.mxu0 0
        %1336 = vmatpush1.bf16.msra.mxu0 0
        %1337 = vmatprep.subr.bf16.mxu0 0
        %1338 = vmatpush1.bf16.msra.mxu0 0
        %1339 = vmatprep.subr.bf16.mxu0 0
        %1340 = vmatpush1.bf16.msra.mxu0 0
        %1341 = vmatprep.subr.bf16.mxu0 0
        %1342 = vmatpush1.bf16.msra.mxu0 0
        %1343 = vmatprep.subr.bf16.mxu0 0
        %1344 = vmatpush1.bf16.msra.mxu0 0
        %1345 = vmatprep.subr.bf16.mxu0 0
        %1346 = vmatpush1.bf16.msra.mxu0 0
        %1347 = vmatprep.subr.bf16.mxu0 0
        %1348 = vmatpush1.bf16.msra.mxu0 0
        %1349 = vmatprep.subr.bf16.mxu0 0
        %1350 = vmatpush1.bf16.msra.mxu0 0
        %1351 = vmatprep.subr.bf16.mxu0 0
        %1352 = vmatpush1.bf16.msra.mxu0 0
        %1353 = vmatprep.subr.bf16.mxu0 0
        %1354 = vmatpush1.bf16.msra.mxu0 0
        %1355 = vmatprep.mubr.bf16.mxu0 0
        %1356 = vmatmul.mubr.bf16.gmra.mrb[0].mxu0 %v1262
        %v1357 = vpop.f32.mrb[0].mxu0
        %v1358 = vadd.f32 0.0, %v1357
        %v1359 = vpop.f32.mrb[0].mxu0
        %v1360 = vadd.f32 0.0, %v1359
        %v1361 = vpop.f32.mrb[0].mxu0
        %v1362 = vpop.f32.mrb[0].mxu0
        %1363 = vdwg.mxu0
        %1364 = vmatprep.subr.bf16.mxu0 %v1280
        %1365 = vmatpush1.bf16.msra.mxu0 %v1277
        %1366 = vmatprep.subr.bf16.mxu0 0
        %1367 = vmatpush1.bf16.msra.mxu0 0
        %1368 = vmatprep.subr.bf16.mxu0 0
        %1369 = vmatpush1.bf16.msra.mxu0 0
        %1370 = vmatprep.subr.bf16.mxu0 0
        %1371 = vmatpush1.bf16.msra.mxu0 0
        %1372 = vmatprep.subr.bf16.mxu0 0
        %1373 = vmatpush1.bf16.msra.mxu0 0
        %1374 = vmatprep.subr.bf16.mxu0 0
        %1375 = vmatpush1.bf16.msra.mxu0 0
        %1376 = vmatprep.subr.bf16.mxu0 0
        %1377 = vmatpush1.bf16.msra.mxu0 0
        %1378 = vmatprep.subr.bf16.mxu0 0
        %1379 = vmatpush1.bf16.msra.mxu0 0
        %1380 = vmatprep.subr.bf16.mxu0 0
        %1381 = vmatpush1.bf16.msra.mxu0 0
        %1382 = vmatprep.subr.bf16.mxu0 0
        %1383 = vmatpush1.bf16.msra.mxu0 0
        %1384 = vmatprep.subr.bf16.mxu0 0
        %1385 = vmatpush1.bf16.msra.mxu0 0
        %1386 = vmatprep.subr.bf16.mxu0 0
        %1387 = vmatpush1.bf16.msra.mxu0 0
        %1388 = vmatprep.subr.bf16.mxu0 0
        %1389 = vmatpush1.bf16.msra.mxu0 0
        %1390 = vmatprep.subr.bf16.mxu0 0
        %1391 = vmatpush1.bf16.msra.mxu0 0
        %1392 = vmatprep.subr.bf16.mxu0 0
        %1393 = vmatpush1.bf16.msra.mxu0 0
        %1394 = vmatprep.subr.bf16.mxu0 0
        %1395 = vmatpush1.bf16.msra.mxu0 0
        %1396 = vmatprep.mubr.bf16.mxu0 0
        %1397 = vmatmul.mubr.bf16.gmra.mrb[0].mxu0 %v1262
        %v1398 = vpop.f32.mrb[0].mxu0
        %v1399 = vadd.f32 0.0, %v1398
        %v1400 = vpop.f32.mrb[0].mxu0
        %v1401 = vadd.f32 0.0, %v1400
        %v1402 = vpop.f32.mrb[0].mxu0
        %v1403 = vpop.f32.mrb[0].mxu0
        %1404 = vdwg.mxu0
        %v1405 = vadd.f32 %v1195, %v1317
        %v1406 = vadd.f32 %v1196, %v1319
        %v1407 = vadd.f32 %v1197, %v1358
        %v1408 = vadd.f32 %v1198, %v1360
        %v1409 = vadd.f32 %v1199, %v1399
        %v1410 = vadd.f32 %v1200, %v1401
        %v1411 = vld [vmem:[%s196] sm:$0xff]
        %v1412 = vld [vmem:[%s196 + $0x8] sm:$0x3f]
        %s1413 = scalar_lea.vmem %s201, 24
        %v1414 = vld [vmem:[%s1413] sm:$0xf]
        %v1417 = vcombine.high %v1411, %v1411
        %v1419 = vunpack.c.l.s4 1983009808
        %v1420 = vunpack.c.0.s8 %v1419
        %v1421 = vlaneseq
        %v1422 = vshrl.u32 %v1421, 7
        %v1423 = vsub.s32 %v1420, %v1422
        %v1424 = vrot.slane %v1411, %v1423
        %v1426 = vunpack.c.l.s4 1983009808
        %v1427 = vunpack.c.0.s8 %v1426
        %v1428 = vlaneseq
        %v1429 = vshrl.u32 %v1428, 7
        %v1430 = vsub.s32 %v1427, %v1429
        %v1431 = vrot.slane %v1417, %v1430
        %v1432 = vcombine.high %v1424, %v1424
        %v1433 = vcombine.high %v1431, %v1431
        %v1434 = vcombine.high %v1412, %v1412
        %v1436 = vunpack.c.l.s4 1983009808
        %v1437 = vunpack.c.0.s8 %v1436
        %v1438 = vlaneseq
        %v1439 = vshrl.u32 %v1438, 7
        %v1440 = vsub.s32 %v1437, %v1439
        %v1441 = vrot.slane %v1412, %v1440
        %v1443 = vunpack.c.l.s4 1983009808
        %v1444 = vunpack.c.0.s8 %v1443
        %v1445 = vlaneseq
        %v1446 = vshrl.u32 %v1445, 7
        %v1447 = vsub.s32 %v1444, %v1446
        %v1448 = vrot.slane %v1434, %v1447
        %v1449 = vcombine.high %v1441, %v1441
        %1450 = vrot.lane.b32.xlu0 %v1424, 92
        %v1451 = vpop.permute.xlu0 %1450
        %1452 = vrot.lane.b32.xlu0 %v1432, 92
        %v1453 = vpop.permute.xlu0 %1452
        %1454 = vrot.lane.b32.xlu0 %v1431, 92
        %v1455 = vpop.permute.xlu0 %1454
        %1456 = vrot.lane.b32.xlu0 %v1433, 92
        %v1457 = vpop.permute.xlu0 %1456
        %1458 = vrot.lane.b32.xlu0 %v1441, 92
        %v1459 = vpop.permute.xlu0 %1458
        %1460 = vrot.lane.b32.xlu0 %v1449, 92
        %v1461 = vpop.permute.xlu0 %1460
        %1462 = vrot.lane.b32.xlu0 %v1448, 92
        %v1463 = vpop.permute.xlu0 %1462
        %vm1464 = vcmask 752640
        %v1465 = vsel %vm1464, %v1451, %v1453
        %v1466 = vsel %vm1464, %v1453, %v1455
        %v1467 = vsel %vm1464, %v1455, %v1457
        %v1468 = vsel %vm1464, %v1457, %v1459
        %v1469 = vsel %vm1464, %v1459, %v1461
        %v1470 = vsel %vm1464, %v1461, %v1463
        %v1472 = vsel %vm269, %v1414, 0
        %v1475 = vand.u32 %v1465, %v276
        %v1478 = vand.u32 %v1466, %v276
        %v1481 = vand.u32 %v1467, %v276
        %v1484 = vand.u32 %v1468, %v276
        %v1487 = vand.u32 %v1469, %v276
        %v1490 = vand.u32 %v1470, %v276
        %1492 = vmatprep.subr.bf16.mxu0 %v1478
        %1493 = vmatpush1.bf16.msra.mxu0 %v1475
        %1494 = vmatprep.subr.bf16.mxu0 0
        %1495 = vmatpush1.bf16.msra.mxu0 0
        %1496 = vmatprep.subr.bf16.mxu0 0
        %1497 = vmatpush1.bf16.msra.mxu0 0
        %1498 = vmatprep.subr.bf16.mxu0 0
        %1499 = vmatpush1.bf16.msra.mxu0 0
        %1500 = vmatprep.subr.bf16.mxu0 0
        %1501 = vmatpush1.bf16.msra.mxu0 0
        %1502 = vmatprep.subr.bf16.mxu0 0
        %1503 = vmatpush1.bf16.msra.mxu0 0
        %1504 = vmatprep.subr.bf16.mxu0 0
        %1505 = vmatpush1.bf16.msra.mxu0 0
        %1506 = vmatprep.subr.bf16.mxu0 0
        %1507 = vmatpush1.bf16.msra.mxu0 0
        %1508 = vmatprep.subr.bf16.mxu0 0
        %1509 = vmatpush1.bf16.msra.mxu0 0
        %1510 = vmatprep.subr.bf16.mxu0 0
        %1511 = vmatpush1.bf16.msra.mxu0 0
        %1512 = vmatprep.subr.bf16.mxu0 0
        %1513 = vmatpush1.bf16.msra.mxu0 0
        %1514 = vmatprep.subr.bf16.mxu0 0
        %1515 = vmatpush1.bf16.msra.mxu0 0
        %1516 = vmatprep.subr.bf16.mxu0 0
        %1517 = vmatpush1.bf16.msra.mxu0 0
        %1518 = vmatprep.subr.bf16.mxu0 0
        %1519 = vmatpush1.bf16.msra.mxu0 0
        %1520 = vmatprep.subr.bf16.mxu0 0
        %1521 = vmatpush1.bf16.msra.mxu0 0
        %1522 = vmatprep.subr.bf16.mxu0 0
        %1523 = vmatpush1.bf16.msra.mxu0 0
        %1524 = vmatprep.mubr.bf16.mxu0 0
        %1525 = vmatmul.mubr.bf16.gmra.mrb[0].mxu0 %v1472
        %v1526 = vpop.f32.mrb[0].mxu0
        %v1527 = vadd.f32 0.0, %v1526
        %v1528 = vpop.f32.mrb[0].mxu0
        %v1529 = vadd.f32 0.0, %v1528
        %v1530 = vpop.f32.mrb[0].mxu0
        %v1531 = vpop.f32.mrb[0].mxu0
        %1532 = vdwg.mxu0
        %1533 = vmatprep.subr.bf16.mxu0 %v1484
        %1534 = vmatpush1.bf16.msra.mxu0 %v1481
        %1535 = vmatprep.subr.bf16.mxu0 0
        %1536 = vmatpush1.bf16.msra.mxu0 0
        %1537 = vmatprep.subr.bf16.mxu0 0
        %1538 = vmatpush1.bf16.msra.mxu0 0
        %1539 = vmatprep.subr.bf16.mxu0 0
        %1540 = vmatpush1.bf16.msra.mxu0 0
        %1541 = vmatprep.subr.bf16.mxu0 0
        %1542 = vmatpush1.bf16.msra.mxu0 0
        %1543 = vmatprep.subr.bf16.mxu0 0
        %1544 = vmatpush1.bf16.msra.mxu0 0
        %1545 = vmatprep.subr.bf16.mxu0 0
        %1546 = vmatpush1.bf16.msra.mxu0 0
        %1547 = vmatprep.subr.bf16.mxu0 0
        %1548 = vmatpush1.bf16.msra.mxu0 0
        %1549 = vmatprep.subr.bf16.mxu0 0
        %1550 = vmatpush1.bf16.msra.mxu0 0
        %1551 = vmatprep.subr.bf16.mxu0 0
        %1552 = vmatpush1.bf16.msra.mxu0 0
        %1553 = vmatprep.subr.bf16.mxu0 0
        %1554 = vmatpush1.bf16.msra.mxu0 0
        %1555 = vmatprep.subr.bf16.mxu0 0
        %1556 = vmatpush1.bf16.msra.mxu0 0
        %1557 = vmatprep.subr.bf16.mxu0 0
        %1558 = vmatpush1.bf16.msra.mxu0 0
        %1559 = vmatprep.subr.bf16.mxu0 0
        %1560 = vmatpush1.bf16.msra.mxu0 0
        %1561 = vmatprep.subr.bf16.mxu0 0
        %1562 = vmatpush1.bf16.msra.mxu0 0
        %1563 = vmatprep.subr.bf16.mxu0 0
        %1564 = vmatpush1.bf16.msra.mxu0 0
        %1565 = vmatprep.mubr.bf16.mxu0 0
        %1566 = vmatmul.mubr.bf16.gmra.mrb[0].mxu0 %v1472
        %v1567 = vpop.f32.mrb[0].mxu0
        %v1568 = vadd.f32 0.0, %v1567
        %v1569 = vpop.f32.mrb[0].mxu0
        %v1570 = vadd.f32 0.0, %v1569
        %v1571 = vpop.f32.mrb[0].mxu0
        %v1572 = vpop.f32.mrb[0].mxu0
        %1573 = vdwg.mxu0
        %1574 = vmatprep.subr.bf16.mxu0 %v1490
        %1575 = vmatpush1.bf16.msra.mxu0 %v1487
        %1576 = vmatprep.subr.bf16.mxu0 0
        %1577 = vmatpush1.bf16.msra.mxu0 0
        %1578 = vmatprep.subr.bf16.mxu0 0
        %1579 = vmatpush1.bf16.msra.mxu0 0
        %1580 = vmatprep.subr.bf16.mxu0 0
        %1581 = vmatpush1.bf16.msra.mxu0 0
        %1582 = vmatprep.subr.bf16.mxu0 0
        %1583 = vmatpush1.bf16.msra.mxu0 0
        %1584 = vmatprep.subr.bf16.mxu0 0
        %1585 = vmatpush1.bf16.msra.mxu0 0
        %1586 = vmatprep.subr.bf16.mxu0 0
        %1587 = vmatpush1.bf16.msra.mxu0 0
        %1588 = vmatprep.subr.bf16.mxu0 0
        %1589 = vmatpush1.bf16.msra.mxu0 0
        %1590 = vmatprep.subr.bf16.mxu0 0
        %1591 = vmatpush1.bf16.msra.mxu0 0
        %1592 = vmatprep.subr.bf16.mxu0 0
        %1593 = vmatpush1.bf16.msra.mxu0 0
        %1594 = vmatprep.subr.bf16.mxu0 0
        %1595 = vmatpush1.bf16.msra.mxu0 0
        %1596 = vmatprep.subr.bf16.mxu0 0
        %1597 = vmatpush1.bf16.msra.mxu0 0
        %1598 = vmatprep.subr.bf16.mxu0 0
        %1599 = vmatpush1.bf16.msra.mxu0 0
        %1600 = vmatprep.subr.bf16.mxu0 0
        %1601 = vmatpush1.bf16.msra.mxu0 0
        %1602 = vmatprep.subr.bf16.mxu0 0
        %1603 = vmatpush1.bf16.msra.mxu0 0
        %1604 = vmatprep.subr.bf16.mxu0 0
        %1605 = vmatpush1.bf16.msra.mxu0 0
        %1606 = vmatprep.mubr.bf16.mxu0 0
        %1607 = vmatmul.mubr.bf16.gmra.mrb[0].mxu0 %v1472
        %v1608 = vpop.f32.mrb[0].mxu0
        %v1609 = vadd.f32 0.0, %v1608
        %v1610 = vpop.f32.mrb[0].mxu0
        %v1611 = vadd.f32 0.0, %v1610
        %v1612 = vpop.f32.mrb[0].mxu0
        %v1613 = vpop.f32.mrb[0].mxu0
        %1614 = vdwg.mxu0
        %v1615 = vadd.f32 %v1405, %v1527
        %v1616 = vadd.f32 %v1406, %v1529
        %v1617 = vadd.f32 %v1407, %v1568
        %v1618 = vadd.f32 %v1408, %v1570
        %v1619 = vadd.f32 %v1409, %v1609
        %v1620 = vadd.f32 %v1410, %v1611
        %v1621 = vld [vmem:[%s196] sm:$0xff]
        %v1622 = vld [vmem:[%s196 + $0x8] sm:$0x3f]
        %s1623 = scalar_lea.vmem %s201, 28
        %v1624 = vld [vmem:[%s1623] sm:$0xf]
        %v1627 = vcombine.high %v1621, %v1621
        %v1629 = vunpack.c.l.s4 1983009808
        %v1630 = vunpack.c.0.s8 %v1629
        %v1631 = vlaneseq
        %v1632 = vshrl.u32 %v1631, 7
        %v1633 = vsub.s32 %v1630, %v1632
        %v1634 = vrot.slane %v1621, %v1633
        %v1636 = vunpack.c.l.s4 1983009808
        %v1637 = vunpack.c.0.s8 %v1636
        %v1638 = vlaneseq
        %v1639 = vshrl.u32 %v1638, 7
        %v1640 = vsub.s32 %v1637, %v1639
        %v1641 = vrot.slane %v1627, %v1640
        %v1642 = vcombine.high %v1634, %v1634
        %v1643 = vcombine.high %v1641, %v1641
        %v1644 = vcombine.high %v1622, %v1622
        %v1646 = vunpack.c.l.s4 1983009808
        %v1647 = vunpack.c.0.s8 %v1646
        %v1648 = vlaneseq
        %v1649 = vshrl.u32 %v1648, 7
        %v1650 = vsub.s32 %v1647, %v1649
        %v1651 = vrot.slane %v1622, %v1650
        %v1653 = vunpack.c.l.s4 1983009808
        %v1654 = vunpack.c.0.s8 %v1653
        %v1655 = vlaneseq
        %v1656 = vshrl.u32 %v1655, 7
        %v1657 = vsub.s32 %v1654, %v1656
        %v1658 = vrot.slane %v1644, %v1657
        %v1659 = vcombine.high %v1651, %v1651
        %1660 = vrot.lane.b32.xlu0 %v1634, 91
        %v1661 = vpop.permute.xlu0 %1660
        %1662 = vrot.lane.b32.xlu0 %v1642, 91
        %v1663 = vpop.permute.xlu0 %1662
        %1664 = vrot.lane.b32.xlu0 %v1641, 91
        %v1665 = vpop.permute.xlu0 %1664
        %1666 = vrot.lane.b32.xlu0 %v1643, 91
        %v1667 = vpop.permute.xlu0 %1666
        %1668 = vrot.lane.b32.xlu0 %v1651, 91
        %v1669 = vpop.permute.xlu0 %1668
        %1670 = vrot.lane.b32.xlu0 %v1659, 91
        %v1671 = vpop.permute.xlu0 %1670
        %1672 = vrot.lane.b32.xlu0 %v1658, 91
        %v1673 = vpop.permute.xlu0 %1672
        %vm1674 = vcmask 744448
        %v1675 = vsel %vm1674, %v1661, %v1663
        %v1676 = vsel %vm1674, %v1663, %v1665
        %v1677 = vsel %vm1674, %v1665, %v1667
        %v1678 = vsel %vm1674, %v1667, %v1669
        %v1679 = vsel %vm1674, %v1669, %v1671
        %v1680 = vsel %vm1674, %v1671, %v1673
        %v1682 = vsel %vm269, %v1624, 0
        %v1685 = vand.u32 %v1675, %v276
        %v1688 = vand.u32 %v1676, %v276
        %v1691 = vand.u32 %v1677, %v276
        %v1694 = vand.u32 %v1678, %v276
        %v1697 = vand.u32 %v1679, %v276
        %v1700 = vand.u32 %v1680, %v276
        %1702 = vmatprep.subr.bf16.mxu0 %v1688
        %1703 = vmatpush1.bf16.msra.mxu0 %v1685
        %1704 = vmatprep.subr.bf16.mxu0 0
        %1705 = vmatpush1.bf16.msra.mxu0 0
        %1706 = vmatprep.subr.bf16.mxu0 0
        %1707 = vmatpush1.bf16.msra.mxu0 0
        %1708 = vmatprep.subr.bf16.mxu0 0
        %1709 = vmatpush1.bf16.msra.mxu0 0
        %1710 = vmatprep.subr.bf16.mxu0 0
        %1711 = vmatpush1.bf16.msra.mxu0 0
        %1712 = vmatprep.subr.bf16.mxu0 0
        %1713 = vmatpush1.bf16.msra.mxu0 0
        %1714 = vmatprep.subr.bf16.mxu0 0
        %1715 = vmatpush1.bf16.msra.mxu0 0
        %1716 = vmatprep.subr.bf16.mxu0 0
        %1717 = vmatpush1.bf16.msra.mxu0 0
        %1718 = vmatprep.subr.bf16.mxu0 0
        %1719 = vmatpush1.bf16.msra.mxu0 0
        %1720 = vmatprep.subr.bf16.mxu0 0
        %1721 = vmatpush1.bf16.msra.mxu0 0
        %1722 = vmatprep.subr.bf16.mxu0 0
        %1723 = vmatpush1.bf16.msra.mxu0 0
        %1724 = vmatprep.subr.bf16.mxu0 0
        %1725 = vmatpush1.bf16.msra.mxu0 0
        %1726 = vmatprep.subr.bf16.mxu0 0
        %1727 = vmatpush1.bf16.msra.mxu0 0
        %1728 = vmatprep.subr.bf16.mxu0 0
        %1729 = vmatpush1.bf16.msra.mxu0 0
        %1730 = vmatprep.subr.bf16.mxu0 0
        %1731 = vmatpush1.bf16.msra.mxu0 0
        %1732 = vmatprep.subr.bf16.mxu0 0
        %1733 = vmatpush1.bf16.msra.mxu0 0
        %1734 = vmatprep.mubr.bf16.mxu0 0
        %1735 = vmatmul.mubr.bf16.gmra.mrb[0].mxu0 %v1682
        %v1736 = vpop.f32.mrb[0].mxu0
        %v1737 = vadd.f32 0.0, %v1736
        %v1738 = vpop.f32.mrb[0].mxu0
        %v1739 = vadd.f32 0.0, %v1738
        %v1740 = vpop.f32.mrb[0].mxu0
        %v1741 = vpop.f32.mrb[0].mxu0
        %1742 = vdwg.mxu0
        %1743 = vmatprep.subr.bf16.mxu0 %v1694
        %1744 = vmatpush1.bf16.msra.mxu0 %v1691
        %1745 = vmatprep.subr.bf16.mxu0 0
        %1746 = vmatpush1.bf16.msra.mxu0 0
        %1747 = vmatprep.subr.bf16.mxu0 0
        %1748 = vmatpush1.bf16.msra.mxu0 0
        %1749 = vmatprep.subr.bf16.mxu0 0
        %1750 = vmatpush1.bf16.msra.mxu0 0
        %1751 = vmatprep.subr.bf16.mxu0 0
        %1752 = vmatpush1.bf16.msra.mxu0 0
        %1753 = vmatprep.subr.bf16.mxu0 0
        %1754 = vmatpush1.bf16.msra.mxu0 0
        %1755 = vmatprep.subr.bf16.mxu0 0
        %1756 = vmatpush1.bf16.msra.mxu0 0
        %1757 = vmatprep.subr.bf16.mxu0 0
        %1758 = vmatpush1.bf16.msra.mxu0 0
        %1759 = vmatprep.subr.bf16.mxu0 0
        %1760 = vmatpush1.bf16.msra.mxu0 0
        %1761 = vmatprep.subr.bf16.mxu0 0
        %1762 = vmatpush1.bf16.msra.mxu0 0
        %1763 = vmatprep.subr.bf16.mxu0 0
        %1764 = vmatpush1.bf16.msra.mxu0 0
        %1765 = vmatprep.subr.bf16.mxu0 0
        %1766 = vmatpush1.bf16.msra.mxu0 0
        %1767 = vmatprep.subr.bf16.mxu0 0
        %1768 = vmatpush1.bf16.msra.mxu0 0
        %1769 = vmatprep.subr.bf16.mxu0 0
        %1770 = vmatpush1.bf16.msra.mxu0 0
        %1771 = vmatprep.subr.bf16.mxu0 0
        %1772 = vmatpush1.bf16.msra.mxu0 0
        %1773 = vmatprep.subr.bf16.mxu0 0
        %1774 = vmatpush1.bf16.msra.mxu0 0
        %1775 = vmatprep.mubr.bf16.mxu0 0
        %1776 = vmatmul.mubr.bf16.gmra.mrb[0].mxu0 %v1682
        %v1777 = vpop.f32.mrb[0].mxu0
        %v1778 = vadd.f32 0.0, %v1777
        %v1779 = vpop.f32.mrb[0].mxu0
        %v1780 = vadd.f32 0.0, %v1779
        %v1781 = vpop.f32.mrb[0].mxu0
        %v1782 = vpop.f32.mrb[0].mxu0
        %1783 = vdwg.mxu0
        %1784 = vmatprep.subr.bf16.mxu0 %v1700
        %1785 = vmatpush1.bf16.msra.mxu0 %v1697
        %1786 = vmatprep.subr.bf16.mxu0 0
        %1787 = vmatpush1.bf16.msra.mxu0 0
        %1788 = vmatprep.subr.bf16.mxu0 0
        %1789 = vmatpush1.bf16.msra.mxu0 0
        %1790 = vmatprep.subr.bf16.mxu0 0
        %1791 = vmatpush1.bf16.msra.mxu0 0
        %1792 = vmatprep.subr.bf16.mxu0 0
        %1793 = vmatpush1.bf16.msra.mxu0 0
        %1794 = vmatprep.subr.bf16.mxu0 0
        %1795 = vmatpush1.bf16.msra.mxu0 0
        %1796 = vmatprep.subr.bf16.mxu0 0
        %1797 = vmatpush1.bf16.msra.mxu0 0
        %1798 = vmatprep.subr.bf16.mxu0 0
        %1799 = vmatpush1.bf16.msra.mxu0 0
        %1800 = vmatprep.subr.bf16.mxu0 0
        %1801 = vmatpush1.bf16.msra.mxu0 0
        %1802 = vmatprep.subr.bf16.mxu0 0
        %1803 = vmatpush1.bf16.msra.mxu0 0
        %1804 = vmatprep.subr.bf16.mxu0 0
        %1805 = vmatpush1.bf16.msra.mxu0 0
        %1806 = vmatprep.subr.bf16.mxu0 0
        %1807 = vmatpush1.bf16.msra.mxu0 0
        %1808 = vmatprep.subr.bf16.mxu0 0
        %1809 = vmatpush1.bf16.msra.mxu0 0
        %1810 = vmatprep.subr.bf16.mxu0 0
        %1811 = vmatpush1.bf16.msra.mxu0 0
        %1812 = vmatprep.subr.bf16.mxu0 0
        %1813 = vmatpush1.bf16.msra.mxu0 0
        %1814 = vmatprep.subr.bf16.mxu0 0
        %1815 = vmatpush1.bf16.msra.mxu0 0
        %1816 = vmatprep.mubr.bf16.mxu0 0
        %1817 = vmatmul.mubr.bf16.gmra.mrb[0].mxu0 %v1682
        %v1818 = vpop.f32.mrb[0].mxu0
        %v1819 = vadd.f32 0.0, %v1818
        %v1820 = vpop.f32.mrb[0].mxu0
        %v1821 = vadd.f32 0.0, %v1820
        %v1822 = vpop.f32.mrb[0].mxu0
        %v1823 = vpop.f32.mrb[0].mxu0
        %1824 = vdwg.mxu0
        %v1825 = vadd.f32 %v1615, %v1737
        %v1826 = vadd.f32 %v1616, %v1739
        %v1827 = vadd.f32 %v1617, %v1778
        %v1828 = vadd.f32 %v1618, %v1780
        %v1829 = vadd.f32 %v1619, %v1819
        %v1830 = vadd.f32 %v1620, %v1821
        %v1831 = vld [vmem:[%s196] sm:$0xff]
        %v1832 = vld [vmem:[%s196 + $0x8] sm:$0x3f]
        %s1833 = scalar_lea.vmem %s201, 32
        %v1834 = vld [vmem:[%s1833] sm:$0xf]
        %v1837 = vcombine.high %v1831, %v1831
        %v1839 = vunpack.c.l.s4 1983009808
        %v1840 = vunpack.c.0.s8 %v1839
        %v1841 = vlaneseq
        %v1842 = vshrl.u32 %v1841, 7
        %v1843 = vsub.s32 %v1840, %v1842
        %v1844 = vrot.slane %v1831, %v1843
        %v1846 = vunpack.c.l.s4 1983009808
        %v1847 = vunpack.c.0.s8 %v1846
        %v1848 = vlaneseq
        %v1849 = vshrl.u32 %v1848, 7
        %v1850 = vsub.s32 %v1847, %v1849
        %v1851 = vrot.slane %v1837, %v1850
        %v1852 = vcombine.high %v1844, %v1844
        %v1853 = vcombine.high %v1851, %v1851
        %v1854 = vcombine.high %v1832, %v1832
        %v1856 = vunpack.c.l.s4 1983009808
        %v1857 = vunpack.c.0.s8 %v1856
        %v1858 = vlaneseq
        %v1859 = vshrl.u32 %v1858, 7
        %v1860 = vsub.s32 %v1857, %v1859
        %v1861 = vrot.slane %v1832, %v1860
        %v1863 = vunpack.c.l.s4 1983009808
        %v1864 = vunpack.c.0.s8 %v1863
        %v1865 = vlaneseq
        %v1866 = vshrl.u32 %v1865, 7
        %v1867 = vsub.s32 %v1864, %v1866
        %v1868 = vrot.slane %v1854, %v1867
        %v1869 = vcombine.high %v1861, %v1861
        %1870 = vrot.lane.b32.xlu0 %v1844, 90
        %v1871 = vpop.permute.xlu0 %1870
        %1872 = vrot.lane.b32.xlu0 %v1852, 90
        %v1873 = vpop.permute.xlu0 %1872
        %1874 = vrot.lane.b32.xlu0 %v1851, 90
        %v1875 = vpop.permute.xlu0 %1874
        %1876 = vrot.lane.b32.xlu0 %v1853, 90
        %v1877 = vpop.permute.xlu0 %1876
        %1878 = vrot.lane.b32.xlu0 %v1861, 90
        %v1879 = vpop.permute.xlu0 %1878
        %1880 = vrot.lane.b32.xlu0 %v1869, 90
        %v1881 = vpop.permute.xlu0 %1880
        %1882 = vrot.lane.b32.xlu0 %v1868, 90
        %v1883 = vpop.permute.xlu0 %1882
        %vm1884 = vcmask 736256
        %v1885 = vsel %vm1884, %v1871, %v1873
        %v1886 = vsel %vm1884, %v1873, %v1875
        %v1887 = vsel %vm1884, %v1875, %v1877
        %v1888 = vsel %vm1884, %v1877, %v1879
        %v1889 = vsel %vm1884, %v1879, %v1881
        %v1890 = vsel %vm1884, %v1881, %v1883
        %v1892 = vsel %vm269, %v1834, 0
        %v1895 = vand.u32 %v1885, %v276
        %v1898 = vand.u32 %v1886, %v276
        %v1901 = vand.u32 %v1887, %v276
        %v1904 = vand.u32 %v1888, %v276
        %v1907 = vand.u32 %v1889, %v276
        %v1910 = vand.u32 %v1890, %v276
        %1912 = vmatprep.subr.bf16.mxu0 %v1898
        %1913 = vmatpush1.bf16.msra.mxu0 %v1895
        %1914 = vmatprep.subr.bf16.mxu0 0
        %1915 = vmatpush1.bf16.msra.mxu0 0
        %1916 = vmatprep.subr.bf16.mxu0 0
        %1917 = vmatpush1.bf16.msra.mxu0 0
        %1918 = vmatprep.subr.bf16.mxu0 0
        %1919 = vmatpush1.bf16.msra.mxu0 0
        %1920 = vmatprep.subr.bf16.mxu0 0
        %1921 = vmatpush1.bf16.msra.mxu0 0
        %1922 = vmatprep.subr.bf16.mxu0 0
        %1923 = vmatpush1.bf16.msra.mxu0 0
        %1924 = vmatprep.subr.bf16.mxu0 0
        %1925 = vmatpush1.bf16.msra.mxu0 0
        %1926 = vmatprep.subr.bf16.mxu0 0
        %1927 = vmatpush1.bf16.msra.mxu0 0
        %1928 = vmatprep.subr.bf16.mxu0 0
        %1929 = vmatpush1.bf16.msra.mxu0 0
        %1930 = vmatprep.subr.bf16.mxu0 0
        %1931 = vmatpush1.bf16.msra.mxu0 0
        %1932 = vmatprep.subr.bf16.mxu0 0
        %1933 = vmatpush1.bf16.msra.mxu0 0
        %1934 = vmatprep.subr.bf16.mxu0 0
        %1935 = vmatpush1.bf16.msra.mxu0 0
        %1936 = vmatprep.subr.bf16.mxu0 0
        %1937 = vmatpush1.bf16.msra.mxu0 0
        %1938 = vmatprep.subr.bf16.mxu0 0
        %1939 = vmatpush1.bf16.msra.mxu0 0
        %1940 = vmatprep.subr.bf16.mxu0 0
        %1941 = vmatpush1.bf16.msra.mxu0 0
        %1942 = vmatprep.subr.bf16.mxu0 0
        %1943 = vmatpush1.bf16.msra.mxu0 0
        %1944 = vmatprep.mubr.bf16.mxu0 0
        %1945 = vmatmul.mubr.bf16.gmra.mrb[0].mxu0 %v1892
        %v1946 = vpop.f32.mrb[0].mxu0
        %v1947 = vadd.f32 0.0, %v1946
        %v1948 = vpop.f32.mrb[0].mxu0
        %v1949 = vadd.f32 0.0, %v1948
        %v1950 = vpop.f32.mrb[0].mxu0
        %v1951 = vpop.f32.mrb[0].mxu0
        %1952 = vdwg.mxu0
        %1953 = vmatprep.subr.bf16.mxu0 %v1904
        %1954 = vmatpush1.bf16.msra.mxu0 %v1901
        %1955 = vmatprep.subr.bf16.mxu0 0
        %1956 = vmatpush1.bf16.msra.mxu0 0
        %1957 = vmatprep.subr.bf16.mxu0 0
        %1958 = vmatpush1.bf16.msra.mxu0 0
        %1959 = vmatprep.subr.bf16.mxu0 0
        %1960 = vmatpush1.bf16.msra.mxu0 0
        %1961 = vmatprep.subr.bf16.mxu0 0
        %1962 = vmatpush1.bf16.msra.mxu0 0
        %1963 = vmatprep.subr.bf16.mxu0 0
        %1964 = vmatpush1.bf16.msra.mxu0 0
        %1965 = vmatprep.subr.bf16.mxu0 0
        %1966 = vmatpush1.bf16.msra.mxu0 0
        %1967 = vmatprep.subr.bf16.mxu0 0
        %1968 = vmatpush1.bf16.msra.mxu0 0
        %1969 = vmatprep.subr.bf16.mxu0 0
        %1970 = vmatpush1.bf16.msra.mxu0 0
        %1971 = vmatprep.subr.bf16.mxu0 0
        %1972 = vmatpush1.bf16.msra.mxu0 0
        %1973 = vmatprep.subr.bf16.mxu0 0
        %1974 = vmatpush1.bf16.msra.mxu0 0
        %1975 = vmatprep.subr.bf16.mxu0 0
        %1976 = vmatpush1.bf16.msra.mxu0 0
        %1977 = vmatprep.subr.bf16.mxu0 0
        %1978 = vmatpush1.bf16.msra.mxu0 0
        %1979 = vmatprep.subr.bf16.mxu0 0
        %1980 = vmatpush1.bf16.msra.mxu0 0
        %1981 = vmatprep.subr.bf16.mxu0 0
        %1982 = vmatpush1.bf16.msra.mxu0 0
        %1983 = vmatprep.subr.bf16.mxu0 0
        %1984 = vmatpush1.bf16.msra.mxu0 0
        %1985 = vmatprep.mubr.bf16.mxu0 0
        %1986 = vmatmul.mubr.bf16.gmra.mrb[0].mxu0 %v1892
        %v1987 = vpop.f32.mrb[0].mxu0
        %v1988 = vadd.f32 0.0, %v1987
        %v1989 = vpop.f32.mrb[0].mxu0
        %v1990 = vadd.f32 0.0, %v1989
        %v1991 = vpop.f32.mrb[0].mxu0
        %v1992 = vpop.f32.mrb[0].mxu0
        %1993 = vdwg.mxu0
        %1994 = vmatprep.subr.bf16.mxu0 %v1910
        %1995 = vmatpush1.bf16.msra.mxu0 %v1907
        %1996 = vmatprep.subr.bf16.mxu0 0
        %1997 = vmatpush1.bf16.msra.mxu0 0
        %1998 = vmatprep.subr.bf16.mxu0 0
        %1999 = vmatpush1.bf16.msra.mxu0 0
        %2000 = vmatprep.subr.bf16.mxu0 0
        %2001 = vmatpush1.bf16.msra.mxu0 0
        %2002 = vmatprep.subr.bf16.mxu0 0
        %2003 = vmatpush1.bf16.msra.mxu0 0
        %2004 = vmatprep.subr.bf16.mxu0 0
        %2005 = vmatpush1.bf16.msra.mxu0 0
        %2006 = vmatprep.subr.bf16.mxu0 0
        %2007 = vmatpush1.bf16.msra.mxu0 0
        %2008 = vmatprep.subr.bf16.mxu0 0
        %2009 = vmatpush1.bf16.msra.mxu0 0
        %2010 = vmatprep.subr.bf16.mxu0 0
        %2011 = vmatpush1.bf16.msra.mxu0 0
        %2012 = vmatprep.subr.bf16.mxu0 0
        %2013 = vmatpush1.bf16.msra.mxu0 0
        %2014 = vmatprep.subr.bf16.mxu0 0
        %2015 = vmatpush1.bf16.msra.mxu0 0
        %2016 = vmatprep.subr.bf16.mxu0 0
        %2017 = vmatpush1.bf16.msra.mxu0 0
        %2018 = vmatprep.subr.bf16.mxu0 0
        %2019 = vmatpush1.bf16.msra.mxu0 0
        %2020 = vmatprep.subr.bf16.mxu0 0
        %2021 = vmatpush1.bf16.msra.mxu0 0
        %2022 = vmatprep.subr.bf16.mxu0 0
        %2023 = vmatpush1.bf16.msra.mxu0 0
        %2024 = vmatprep.subr.bf16.mxu0 0
        %2025 = vmatpush1.bf16.msra.mxu0 0
        %2026 = vmatprep.mubr.bf16.mxu0 0
        %2027 = vmatmul.mubr.bf16.gmra.mrb[0].mxu0 %v1892
        %v2028 = vpop.f32.mrb[0].mxu0
        %v2029 = vadd.f32 0.0, %v2028
        %v2030 = vpop.f32.mrb[0].mxu0
        %v2031 = vadd.f32 0.0, %v2030
        %v2032 = vpop.f32.mrb[0].mxu0
        %v2033 = vpop.f32.mrb[0].mxu0
        %2034 = vdwg.mxu0
        %v2035 = vadd.f32 %v1825, %v1947
        %v2036 = vadd.f32 %v1826, %v1949
        %v2037 = vadd.f32 %v1827, %v1988
        %v2038 = vadd.f32 %v1828, %v1990
        %v2039 = vadd.f32 %v1829, %v2029
        %v2040 = vadd.f32 %v1830, %v2031
        %v2041 = vld [vmem:[%s205] sm:$0xff]
        %2043 = vset.pattern.permute.xlu0 0
        %2044 = vperm.xlu0 %2043, %v2041
        %v2045 = vpop.permute.xlu0 %2044
        %v2047 = vadd.f32 %v2035, %v2045
        %v2048 = vadd.f32 %v2036, %v2045
        %v2049 = vadd.f32 %v2037, %v2045
        %v2050 = vadd.f32 %v2038, %v2045
        %v2051 = vadd.f32 %v2039, %v2045
        %v2052 = vadd.f32 %v2040, %v2045
        %v2053 = vmax.f32 %v2047, 0.0
        %v2054 = vmax.f32 %v2048, 0.0
        %v2055 = vmax.f32 %v2049, 0.0
        %v2056 = vmax.f32 %v2050, 0.0
        %v2057 = vmax.f32 %v2051, 0.0
        %v2058 = vmax.f32 %v2052, 0.0
        %v2059 = vpack.c.bf16 %v2053, %v2053
        %v2060 = vpack.c.bf16 %v2054, %v2054
        %v2061 = vpack.c.bf16 %v2055, %v2055
        %v2062 = vpack.c.bf16 %v2056, %v2056
        %v2063 = vpack.c.bf16 %v2057, %v2057
        %v2064 = vpack.c.bf16 %v2058, %v2058
        %v2071 = vunpack.c.l.b16 %v2059
        %v2072 = vunpack.c.l.b16 %v2060
        %v2073 = vunpack.c.l.b16 %v2061
        %v2074 = vunpack.c.l.b16 %v2062
        %v2075 = vunpack.c.l.b16 %v2063
        %v2076 = vunpack.c.l.b16 %v2064
        %v2077 = vpack.c.b16 %v2072, %v2071
        %v2078 = vpack.c.b16 %v2074, %v2073
        %v2079 = vpack.c.b16 %v2076, %v2075
        %2083 = vst [vmem:[%s191] sm:$0xff] %v2077
        %2084 = vst [vmem:[%s191 + $0x8] sm:$0xff] %v2078
        %2085 = vst [vmem:[%s191 + $0x10] sm:$0xff] %v2079
        %s2086 = sand.u32 %s103, 1
        %s2087 = scalar_lea.sflag [#allocation3], %s2086
        %s2088 = sand.u32 %s103, 1
        %s2089 = smul.addr %s2088, 24
        %s2090 = scalar_lea.vmem [#allocation2], %s2089
        // Predicated region
        $region33: #{tpu_custom_call.1} parent=31 // pred_check
          %p2091 = pneg %p113
        $region34: #{tpu_custom_call.1} parent=31 // pred_check_branch
          %2093 = sbr.rel (%p2091) target = $region36
        $region35: #{tpu_custom_call.1} parent=31 // pred_region
          %s2095 = ssub.s32 384, 384
          %2096 = vsyncadd %s2087, %s2095
          %s2097 = smul.addr %s17, 6
          %s2098 = smul.addr %s2097, 64
          %s2099 = scalar_lea.hbm %s3, %s2098
          %s2101 = sshll.u32 %s2090, 4
          %s2102 = int_to_ptr.vmem [resolvable:$true] %s2101
          %2104 = dma.vmem_to_hbm [thread:$0]  %s2102, 384, %s2099, %s2087
        $region36: #{tpu_custom_call.1} parent=31 // pred_fallthru
          _
      $region32: #{tpu_custom_call.1} parent=5 // pred_fallthru
        _
      %p2105 = scmp.le.s32.totalorder 2, %s12
      // Predicated region
      $region37: #{tpu_custom_call.1} parent=5 // pred_check
        %p2106 = pneg %p2105
      $region38: #{tpu_custom_call.1} parent=5 // pred_check_branch
        %2108 = sbr.rel (%p2106) target = $region40
      $region39: #{tpu_custom_call.1} parent=5 // pred_region
        %s2109 = ssub.s32 %s12, 2
        // Predicated region
        $region41: #{tpu_custom_call.1} parent=39 // pred_check
          %p2110 = pneg %p119
        $region42: #{tpu_custom_call.1} parent=39 // pred_check_branch
          %2112 = sbr.rel (%p2110) target = $region44
        $region43: #{tpu_custom_call.1} parent=39 // pred_region
          %s2113 = sand.u32 %s104, 1
          %s2114 = scalar_lea.sflag [#allocation3], %s2113
          %s2115 = sand.u32 %s104, 1
          %s2116 = smul.addr %s2115, 24
          %s2117 = scalar_lea.vmem [#allocation2], %s2116
          %2118 = dma.done %s2114, 384
        $region44: #{tpu_custom_call.1} parent=39 // pred_fallthru
          _
      $region40: #{tpu_custom_call.1} parent=5 // pred_fallthru
        _
    $region6: #{tpu_custom_call.1} parent=1 // loop_footer
      %s16 = sadd.s32 1, %s12
    $region7: #{tpu_custom_call.1} parent=1 // loop_footer_branch
      %11 = sbr.rel target = $region3
    $region8: #{tpu_custom_call.1} parent=1 // loop_exit
      _
    %2119 = vsyncpa [#allocation3], 1
    %s2120 = scalar_lea.sflag [#allocation3], 1
    %2121 = vsyncpa %s2120, 1

</llo_original>
